<compile_context>
chip_gen: v5e
topology: v5e:2x2
jax: 0.10.0
libtpu: 0.0.40
codegen_flags: <defaults>
</compile_context>

<pallas_src>
import functools

import numpy as np

import jax
import jax.numpy as jnp
from jax import lax
from jax.experimental import pallas as pl
from jax.experimental.pallas import tpu as pltpu

IN_CHANS = 4
OUT_CHANS = 8
RATE = 1
BN_EPS = 1e-5
DILATIONS = (6 * RATE, 12 * RATE, 18 * RATE)
CHUNK = 4           # off-centre taps fused per accumulation step


# ------------------------- one-time host-side prep ------------------------- #
def _kept_offsets(d, h, w):
    """Non-centre taps of a dilated 3x3 conv that can ever touch real data."""
    offs = []
    for ky in range(3):
        for kx in range(3):
            oy, ox = (ky - 1) * d, (kx - 1) * d
            if oy == 0 and ox == 0:
                continue                       # centre tap handled separately
            if abs(oy) >= h or abs(ox) >= w:
                continue                       # tap reads only zero padding
            offs.append((ky, kx, oy, ox))
    return offs


def _tap_mask(oy, ox, h, w):
    """(h*w,) 0/1 mask: 1 where the read at (y+oy, x+ox) lies inside the image."""
    yy, xx = np.meshgrid(np.arange(h), np.arange(w), indexing="ij")
    ok = (yy + oy >= 0) & (yy + oy < h) & (xx + ox >= 0) & (xx + ox < w)
    return ok.reshape(-1).astype(np.float32)


def _fold_bn(w_hwio, b, bnp):
    """Fold eval-mode BatchNorm into the preceding conv's weight/bias (numpy)."""
    w = np.asarray(w_hwio, np.float32)
    b = np.asarray(b, np.float32)
    gamma = np.asarray(bnp["gamma"], np.float32)
    beta = np.asarray(bnp["beta"], np.float32)
    mean = np.asarray(bnp["mean"], np.float32)
    var = np.asarray(bnp["var"], np.float32)
    scale = gamma / np.sqrt(var + BN_EPS)              # (Cout,)
    return w * scale, (b - mean) * scale + beta


def prepare_aspp(params, h, w):
    """Assemble fused weights / tap masks ONCE (host-side numpy, no XLA ops)."""
    hw = h * w
    cin = int(params["w1"].shape[2])
    cout = int(params["w1"].shape[3])

    w1, b1 = _fold_bn(params["w1"], params["b1"], params["bn1"])
    w2, b2 = _fold_bn(params["w2"], params["b2"], params["bn2"])
    w3, b3 = _fold_bn(params["w3"], params["b3"], params["bn3"])
    w4, b4 = _fold_bn(params["w4"], params["b4"], params["bn4"])
    w5, b5 = _fold_bn(params["w5"], params["b5"], params["bn5"])
    wc, bc = _fold_bn(params["wc"], params["bc"], params["bnc"])
    dil_w = (w2, w3, w4)                               # HWIO (3,3,cin,cout)

    # Centre taps (shared input x) of all four spatial branches.
    w_ctr = np.zeros((4 * cout, cin), np.float32)
    w_ctr[0:cout] = w1.reshape(cin, cout).T
    for bi in range(3):
        w_ctr[(bi + 1) * cout:(bi + 2) * cout] = dil_w[bi][1, 1].T
    ball = np.concatenate([b1, b2, b3, b4]).reshape(4 * cout, 1).astype(np.float32)

    # Surviving off-centre taps (at 16x16 the d=18 branch keeps only its centre).
    taps = [(bi, ky, kx, oy, ox)
            for bi, d in enumerate(DILATIONS)
            for ky, kx, oy, ox in _kept_offsets(d, h, w)]
    ntaps = len(taps)
    nchunks = max(1, -(-ntaps // CHUNK))
    ntaps_pad = nchunks * CHUNK

    wchunks = np.zeros((nchunks, 4 * cout, CHUNK * cin), np.float32)
    mchunks = np.zeros((nchunks, CHUNK * cin, hw), np.float32)
    shifts = []
    for t in range(ntaps_pad):
        if t < ntaps:
            bi, ky, kx, oy, ox = taps[t]
            c, k = divmod(t, CHUNK)
            r0 = (bi + 1) * cout
            wchunks[c, r0:r0 + cout, k * cin:(k + 1) * cin] = dil_w[bi][ky, kx].T
            mchunks[c, k * cin:(k + 1) * cin, :] = _tap_mask(oy, ox, h, w)[None, :]
            # roll amount so that rolled[:, p] == x[:, p + oy*w + ox] at valid p
            shifts.append(int((-(oy * w + ox)) % hw))
        else:
            shifts.append(0)                           # padded tap: zero weight/mask

    w5m = np.ascontiguousarray(w5.reshape(cin, cout).T, dtype=np.float32)   # (cout,cin)
    b5m = b5.reshape(cout, 1).astype(np.float32)
    wc2 = wc.reshape(5 * cout, cout)                                        # rows=cat ch
    wcsp = np.ascontiguousarray(wc2[:4 * cout, :].T, dtype=np.float32)      # (cout,4cout)
    wc5 = np.ascontiguousarray(wc2[4 * cout:, :].T, dtype=np.float32)       # (cout,cout)
    bcm = bc.reshape(cout, 1).astype(np.float32)

    consts = tuple(jnp.asarray(a) for a in
                   (w_ctr, ball, wchunks, mchunks, w5m, b5m, wcsp, wc5, bcm))
    meta = dict(cout=cout, nchunks=nchunks, shifts=tuple(shifts))
    return consts, meta


# ------------------------------ Pallas kernel ------------------------------ #
def _aspp_kernel(x_ref, wctr_ref, ball_ref, wchk_ref, mchk_ref,
                 w5_ref, b5_ref, wcsp_ref, wc5_ref, bc_ref, o_ref,
                 *, shifts, nchunks, chunk):
    """One batch element per grid step.  All tensors are (channels, H*W)."""
    x = x_ref[...]                                       # (cin, hw) lane-dense

    # Four spatial branches (1x1 + three dilated 3x3), BN folded.
    # Centre taps of every branch share x as their input block.
    acc = jnp.dot(wctr_ref[...], x,
                  preferred_element_type=jnp.float32) + ball_ref[...]

    # Off-centre taps: pltpu.roll (XLU) + precomputed validity mask exactly
    # reproduce the zero-padded dilated conv.  Chunked matmul accumulation
    # keeps only ~one chunk of shifted copies live at a time.
    for c in range(nchunks):
        pieces = []
        for k in range(chunk):
            sh = shifts[c * chunk + k]
            pieces.append(x if sh == 0 else pltpu.roll(x, shift=sh, axis=1))
        cols = jnp.concatenate(pieces, axis=0) * mchk_ref[c]     # (chunk*cin, hw)
        acc = acc + jnp.dot(wchk_ref[c], cols,
                            preferred_element_type=jnp.float32)
    br = jnp.maximum(acc, 0.0)                           # (4*cout, hw)

    # Branch 5 on the pooled column only: global mean -> 1x1 conv -> BN -> ReLU.
    # The bilinear upsample of a 1x1 map (align_corners=True) is spatially
    # constant, so its conv_cat contribution is one (cout, 1) column.
    pooled = jnp.mean(x, axis=1, keepdims=True)          # (cin, 1)
    br5 = jnp.maximum(
        jnp.dot(w5_ref[...], pooled, preferred_element_type=jnp.float32)
        + b5_ref[...], 0.0)                              # (cout, 1)
    konst = jnp.dot(wc5_ref[...], br5,
                    preferred_element_type=jnp.float32) + bc_ref[...]

    # conv_cat over the four spatial branches + the constant branch-5 column.
    out = jnp.dot(wcsp_ref[...], br,
                  preferred_element_type=jnp.float32) + konst
    o_ref[...] = jnp.maximum(out, 0.0)                   # (cout, hw) lane-dense


# -------------------------------- glue code -------------------------------- #
def make_aspp_forward(params, h, w):
    """One-time weight assembly (hoisted out of the forward path) -> jitted fwd."""
    consts, meta = prepare_aspp(params, h, w)
    cout = meta["cout"]
    kernel = functools.partial(_aspp_kernel, shifts=meta["shifts"],
                               nchunks=meta["nchunks"], chunk=CHUNK)

    def const_spec(a):
        nd = a.ndim
        return pl.BlockSpec(a.shape, lambda i, _nd=nd: (0,) * _nd)

    @jax.jit
    def _forward(x_nchw, consts):
        n, cin, hh, ww = x_nchw.shape
        hw = hh * ww
        # NCHW is already (C, H*W) per batch element: pure reshape, no transpose.
        x = x_nchw.reshape(n, cin, hw).astype(jnp.float32)

        # Grid over batch, marked parallel: on v7x the two TensorCores each
        # take a batch element.  (For large n on single-TC v5e/v6e, fold
        # several elements per step to amortize the ~0.35us step overhead.)
        out = pl.pallas_call(
            kernel,
            out_shape=jax.ShapeDtypeStruct((n, cout, hw), jnp.float32),
            grid=(n,),
            in_specs=[pl.BlockSpec((None, cin, hw), lambda i: (i, 0, 0))]
                     + [const_spec(a) for a in consts],
            out_specs=pl.BlockSpec((None, cout, hw), lambda i: (i, 0, 0)),
            compiler_params=pltpu.CompilerParams(
                dimension_semantics=("parallel",)),
        )(x, *consts)
        return out.reshape(n, cout, hh, ww)               # already NCHW

    return lambda x_nchw: _forward(x_nchw, consts)


def init_params(key, cin, cout):
    cnt = [0]

    def draw(shape, scale=0.1):
        cnt[0] += 1
        return scale * jax.random.normal(jax.random.fold_in(key, cnt[0]),
                                         shape, jnp.float32)

    def bn(c):
        return dict(gamma=1.0 + draw((c,)), beta=draw((c,)),
                    mean=draw((c,)), var=1.0 + jnp.abs(draw((c,), 0.5)))

    p = {}
    p["w1"], p["b1"], p["bn1"] = draw((1, 1, cin, cout)), draw((cout,)), bn(cout)
    p["w2"], p["b2"], p["bn2"] = draw((3, 3, cin, cout)), draw((cout,)), bn(cout)
    p["w3"], p["b3"], p["bn3"] = draw((3, 3, cin, cout)), draw((cout,)), bn(cout)
    p["w4"], p["b4"], p["bn4"] = draw((3, 3, cin, cout)), draw((cout,)), bn(cout)
    p["w5"], p["b5"], p["bn5"] = draw((1, 1, cin, cout)), draw((cout,)), bn(cout)
    p["wc"], p["bc"], p["bnc"] = draw((1, 1, 5 * cout, cout)), draw((cout,)), bn(cout)
    return p


# --------------------- pure-JAX reference for checking --------------------- #
def aspp_reference(x_nchw, params):
    x = jnp.transpose(x_nchw, (0, 2, 3, 1)).astype(jnp.float32)
    n, h, w, _ = x.shape
    dn = ("NHWC", "HWIO", "NHWC")

    def cbr(inp, wk, b, bnp, dil):
        pad = dil * (wk.shape[0] - 1) // 2
        y = lax.conv_general_dilated(inp, wk, (1, 1), ((pad, pad), (pad, pad)),
                                     rhs_dilation=(dil, dil),
                                     dimension_numbers=dn) + b
        y = (y - bnp["mean"]) / jnp.sqrt(bnp["var"] + BN_EPS) * bnp["gamma"] \
            + bnp["beta"]
        return jnp.maximum(y, 0.0)

    br1 = cbr(x, params["w1"], params["b1"], params["bn1"], 1)
    br2 = cbr(x, params["w2"], params["b2"], params["bn2"], DILATIONS[0])
    br3 = cbr(x, params["w3"], params["b3"], params["bn3"], DILATIONS[1])
    br4 = cbr(x, params["w4"], params["b4"], params["bn4"], DILATIONS[2])
    g = jnp.mean(x, axis=(1, 2), keepdims=True)
    g = cbr(g, params["w5"], params["b5"], params["bn5"], 1)
    g = jnp.broadcast_to(g, (n, h, w, g.shape[-1]))
    cat = jnp.concatenate([br1, br2, br3, br4, g], axis=-1)
    out = cbr(cat, params["wc"], params["bc"], params["bnc"], 1)
    return jnp.transpose(out, (0, 3, 1, 2))


if __name__ == "__main__":
    key = jax.random.PRNGKey(0)
    xkey, pkey = jax.random.split(key)
    x = jax.random.normal(xkey, (2, IN_CHANS, 16, 16), jnp.float32)
    params = init_params(pkey, IN_CHANS, OUT_CHANS)

    fwd = make_aspp_forward(params, 16, 16)     # one-time weight/mask assembly
    out = jax.block_until_ready(fwd(x))

    ref = aspp_reference(x, params)
    assert out.shape == (2, OUT_CHANS, 16, 16), out.shape
    assert jnp.allclose(out, ref, atol=1e-3, rtol=1e-3), \
        float(jnp.max(jnp.abs(out - ref)))
    print("KERNEL_OK")
</pallas_src>

<mosaic_0001>
module attributes {stable_mosaic.version = 11 : i64} {
  func.func @_aspp_kernel(%arg0: i32, %arg1: memref<1x4x256xf32, #tpu.memory_space<vmem>>, %arg2: memref<32x4xf32, #tpu.memory_space<vmem>>, %arg3: memref<32x1xf32, #tpu.memory_space<vmem>>, %arg4: memref<4x32x16xf32, #tpu.memory_space<vmem>>, %arg5: memref<4x16x256xf32, #tpu.memory_space<vmem>>, %arg6: memref<8x4xf32, #tpu.memory_space<vmem>>, %arg7: memref<8x1xf32, #tpu.memory_space<vmem>>, %arg8: memref<8x32xf32, #tpu.memory_space<vmem>>, %arg9: memref<8x8xf32, #tpu.memory_space<vmem>>, %arg10: memref<8x1xf32, #tpu.memory_space<vmem>>, %arg11: memref<1x8x256xf32, #tpu.memory_space<vmem>>) attributes {dimension_semantics = [#tpu.dimension_semantics<parallel>], iteration_bounds = array<i64: 2>, scalar_prefetch = 0 : i64, scratch_operands = 0 : i64, tpu.core_type = #tpu.core_type<tc>, window_params = [{transform_indices = @transform_0, window_bounds = array<i64: 1, 4, 256>}, {pipeline_mode = #tpu.pipeline_mode<synchronous>, transform_indices = @transform_1, window_bounds = array<i64: 32, 4>}, {pipeline_mode = #tpu.pipeline_mode<synchronous>, transform_indices = @transform_2, window_bounds = array<i64: 32, 1>}, {pipeline_mode = #tpu.pipeline_mode<synchronous>, transform_indices = @transform_3, window_bounds = array<i64: 4, 32, 16>}, {pipeline_mode = #tpu.pipeline_mode<synchronous>, transform_indices = @transform_4, window_bounds = array<i64: 4, 16, 256>}, {pipeline_mode = #tpu.pipeline_mode<synchronous>, transform_indices = @transform_5, window_bounds = array<i64: 8, 4>}, {pipeline_mode = #tpu.pipeline_mode<synchronous>, transform_indices = @transform_6, window_bounds = array<i64: 8, 1>}, {pipeline_mode = #tpu.pipeline_mode<synchronous>, transform_indices = @transform_7, window_bounds = array<i64: 8, 32>}, {pipeline_mode = #tpu.pipeline_mode<synchronous>, transform_indices = @transform_8, window_bounds = array<i64: 8, 8>}, {pipeline_mode = #tpu.pipeline_mode<synchronous>, transform_indices = @transform_9, window_bounds = array<i64: 8, 1>}, {transform_indices = @transform_10, window_bounds = array<i64: 1, 8, 256>}]} {
    %c0 = arith.constant 0 : index
    %c0_0 = arith.constant 0 : index
    %c0_1 = arith.constant 0 : index
    %0 = vector.load %arg1[%c0, %c0_0, %c0_1] : memref<1x4x256xf32, #tpu.memory_space<vmem>>, vector<1x4x256xf32>
    %1 = vector.shape_cast %0 : vector<1x4x256xf32> to vector<4x256xf32>
    %c0_2 = arith.constant 0 : index
    %c0_3 = arith.constant 0 : index
    %2 = vector.load %arg2[%c0_2, %c0_3] : memref<32x4xf32, #tpu.memory_space<vmem>>, vector<32x4xf32>
    %cst = arith.constant dense<0.000000e+00> : vector<32x256xf32>
    %3 = tpu.matmul %2, %1, %cst {dimension_numbers = #tpu.dot_dimension_numbers<[1], [0], [0], [1], [0, 0, 1, 1], [], []>} : vector<32x4xf32>, vector<4x256xf32>, vector<32x256xf32> -> vector<32x256xf32>
    %c0_4 = arith.constant 0 : index
    %c0_5 = arith.constant 0 : index
    %4 = vector.load %arg3[%c0_4, %c0_5] : memref<32x1xf32, #tpu.memory_space<vmem>>, vector<32x1xf32>
    %5 = vector.broadcast %4 : vector<32x1xf32> to vector<32x256xf32>
    %6 = arith.addf %3, %5 : vector<32x256xf32>
    %c102_i32 = arith.constant 102 : i32
    %7 = tpu.dynamic_rotate %1 by %c102_i32 dim 1 : vector<4x256xf32>, i32 -> vector<4x256xf32>
    %c96_i32 = arith.constant 96 : i32
    %8 = tpu.dynamic_rotate %1 by %c96_i32 dim 1 : vector<4x256xf32>, i32 -> vector<4x256xf32>
    %c90_i32 = arith.constant 90 : i32
    %9 = tpu.dynamic_rotate %1 by %c90_i32 dim 1 : vector<4x256xf32>, i32 -> vector<4x256xf32>
    %c6_i32 = arith.constant 6 : i32
    %10 = tpu.dynamic_rotate %1 by %c6_i32 dim 1 : vector<4x256xf32>, i32 -> vector<4x256xf32>
    %11 = tpu.concatenate %7, %8, %9, %10 in 0 : vector<4x256xf32>, vector<4x256xf32>, vector<4x256xf32>, vector<4x256xf32> -> vector<16x256xf32>
    %c0_6 = arith.constant 0 : index
    %c0_7 = arith.constant 0 : index
    %c0_8 = arith.constant 0 : index
    %12 = vector.load %arg5[%c0_6, %c0_7, %c0_8] : memref<4x16x256xf32, #tpu.memory_space<vmem>>, vector<1x16x256xf32>
    %13 = vector.shape_cast %12 : vector<1x16x256xf32> to vector<16x256xf32>
    %14 = arith.mulf %11, %13 : vector<16x256xf32>
    %c0_9 = arith.constant 0 : index
    %c0_10 = arith.constant 0 : index
    %c0_11 = arith.constant 0 : index
    %15 = vector.load %arg4[%c0_9, %c0_10, %c0_11] : memref<4x32x16xf32, #tpu.memory_space<vmem>>, vector<1x32x16xf32>
    %16 = vector.shape_cast %15 : vector<1x32x16xf32> to vector<32x16xf32>
    %cst_12 = arith.constant dense<0.000000e+00> : vector<32x256xf32>
    %17 = tpu.matmul %16, %14, %cst_12 {dimension_numbers = #tpu.dot_dimension_numbers<[1], [0], [0], [1], [0, 0, 1, 1], [], []>} : vector<32x16xf32>, vector<16x256xf32>, vector<32x256xf32> -> vector<32x256xf32>
    %18 = arith.addf %6, %17 : vector<32x256xf32>
    %c250_i32 = arith.constant 250 : i32
    %19 = tpu.dynamic_rotate %1 by %c250_i32 dim 1 : vector<4x256xf32>, i32 -> vector<4x256xf32>
    %c166_i32 = arith.constant 166 : i32
    %20 = tpu.dynamic_rotate %1 by %c166_i32 dim 1 : vector<4x256xf32>, i32 -> vector<4x256xf32>
    %c160_i32 = arith.constant 160 : i32
    %21 = tpu.dynamic_rotate %1 by %c160_i32 dim 1 : vector<4x256xf32>, i32 -> vector<4x256xf32>
    %c154_i32 = arith.constant 154 : i32
    %22 = tpu.dynamic_rotate %1 by %c154_i32 dim 1 : vector<4x256xf32>, i32 -> vector<4x256xf32>
    %23 = tpu.concatenate %19, %20, %21, %22 in 0 : vector<4x256xf32>, vector<4x256xf32>, vector<4x256xf32>, vector<4x256xf32> -> vector<16x256xf32>
    %c1 = arith.constant 1 : index
    %c0_13 = arith.constant 0 : index
    %c0_14 = arith.constant 0 : index
    %24 = vector.load %arg5[%c1, %c0_13, %c0_14] : memref<4x16x256xf32, #tpu.memory_space<vmem>>, vector<1x16x256xf32>
    %25 = vector.shape_cast %24 : vector<1x16x256xf32> to vector<16x256xf32>
    %26 = arith.mulf %23, %25 : vector<16x256xf32>
    %c1_15 = arith.constant 1 : index
    %c0_16 = arith.constant 0 : index
    %c0_17 = arith.constant 0 : index
    %27 = vector.load %arg4[%c1_15, %c0_16, %c0_17] : memref<4x32x16xf32, #tpu.memory_space<vmem>>, vector<1x32x16xf32>
    %28 = vector.shape_cast %27 : vector<1x32x16xf32> to vector<32x16xf32>
    %cst_18 = arith.constant dense<0.000000e+00> : vector<32x256xf32>
    %29 = tpu.matmul %28, %26, %cst_18 {dimension_numbers = #tpu.dot_dimension_numbers<[1], [0], [0], [1], [0, 0, 1, 1], [], []>} : vector<32x16xf32>, vector<16x256xf32>, vector<32x256xf32> -> vector<32x256xf32>
    %30 = arith.addf %18, %29 : vector<32x256xf32>
    %c204_i32 = arith.constant 204 : i32
    %31 = tpu.dynamic_rotate %1 by %c204_i32 dim 1 : vector<4x256xf32>, i32 -> vector<4x256xf32>
    %c192_i32 = arith.constant 192 : i32
    %32 = tpu.dynamic_rotate %1 by %c192_i32 dim 1 : vector<4x256xf32>, i32 -> vector<4x256xf32>
    %c180_i32 = arith.constant 180 : i32
    %33 = tpu.dynamic_rotate %1 by %c180_i32 dim 1 : vector<4x256xf32>, i32 -> vector<4x256xf32>
    %c12_i32 = arith.constant 12 : i32
    %34 = tpu.dynamic_rotate %1 by %c12_i32 dim 1 : vector<4x256xf32>, i32 -> vector<4x256xf32>
    %35 = tpu.concatenate %31, %32, %33, %34 in 0 : vector<4x256xf32>, vector<4x256xf32>, vector<4x256xf32>, vector<4x256xf32> -> vector<16x256xf32>
    %c2 = arith.constant 2 : index
    %c0_19 = arith.constant 0 : index
    %c0_20 = arith.constant 0 : index
    %36 = vector.load %arg5[%c2, %c0_19, %c0_20] : memref<4x16x256xf32, #tpu.memory_space<vmem>>, vector<1x16x256xf32>
    %37 = vector.shape_cast %36 : vector<1x16x256xf32> to vector<16x256xf32>
    %38 = arith.mulf %35, %37 : vector<16x256xf32>
    %c2_21 = arith.constant 2 : index
    %c0_22 = arith.constant 0 : index
    %c0_23 = arith.constant 0 : index
    %39 = vector.load %arg4[%c2_21, %c0_22, %c0_23] : memref<4x32x16xf32, #tpu.memory_space<vmem>>, vector<1x32x16xf32>
    %40 = vector.shape_cast %39 : vector<1x32x16xf32> to vector<32x16xf32>
    %cst_24 = arith.constant dense<0.000000e+00> : vector<32x256xf32>
    %41 = tpu.matmul %40, %38, %cst_24 {dimension_numbers = #tpu.dot_dimension_numbers<[1], [0], [0], [1], [0, 0, 1, 1], [], []>} : vector<32x16xf32>, vector<16x256xf32>, vector<32x256xf32> -> vector<32x256xf32>
    %42 = arith.addf %30, %41 : vector<32x256xf32>
    %c244_i32 = arith.constant 244 : i32
    %43 = tpu.dynamic_rotate %1 by %c244_i32 dim 1 : vector<4x256xf32>, i32 -> vector<4x256xf32>
    %c76_i32 = arith.constant 76 : i32
    %44 = tpu.dynamic_rotate %1 by %c76_i32 dim 1 : vector<4x256xf32>, i32 -> vector<4x256xf32>
    %c64_i32 = arith.constant 64 : i32
    %45 = tpu.dynamic_rotate %1 by %c64_i32 dim 1 : vector<4x256xf32>, i32 -> vector<4x256xf32>
    %c52_i32 = arith.constant 52 : i32
    %46 = tpu.dynamic_rotate %1 by %c52_i32 dim 1 : vector<4x256xf32>, i32 -> vector<4x256xf32>
    %47 = tpu.concatenate %43, %44, %45, %46 in 0 : vector<4x256xf32>, vector<4x256xf32>, vector<4x256xf32>, vector<4x256xf32> -> vector<16x256xf32>
    %c3 = arith.constant 3 : index
    %c0_25 = arith.constant 0 : index
    %c0_26 = arith.constant 0 : index
    %48 = vector.load %arg5[%c3, %c0_25, %c0_26] : memref<4x16x256xf32, #tpu.memory_space<vmem>>, vector<1x16x256xf32>
    %49 = vector.shape_cast %48 : vector<1x16x256xf32> to vector<16x256xf32>
    %50 = arith.mulf %47, %49 : vector<16x256xf32>
    %c3_27 = arith.constant 3 : index
    %c0_28 = arith.constant 0 : index
    %c0_29 = arith.constant 0 : index
    %51 = vector.load %arg4[%c3_27, %c0_28, %c0_29] : memref<4x32x16xf32, #tpu.memory_space<vmem>>, vector<1x32x16xf32>
    %52 = vector.shape_cast %51 : vector<1x32x16xf32> to vector<32x16xf32>
    %cst_30 = arith.constant dense<0.000000e+00> : vector<32x256xf32>
    %53 = tpu.matmul %52, %50, %cst_30 {dimension_numbers = #tpu.dot_dimension_numbers<[1], [0], [0], [1], [0, 0, 1, 1], [], []>} : vector<32x16xf32>, vector<16x256xf32>, vector<32x256xf32> -> vector<32x256xf32>
    %54 = arith.addf %42, %53 : vector<32x256xf32>
    %cst_31 = arith.constant 0.000000e+00 : f32
    %55 = vector.broadcast %cst_31 : f32 to vector<32x256xf32>
    %56 = arith.maximumf %54, %55 : vector<32x256xf32>
    %cst_32 = arith.constant dense<0.000000e+00> : vector<4xf32>
    %57 = vector.multi_reduction <add>, %1, %cst_32 [1] : vector<4x256xf32> to vector<4xf32>
    %58 = vector.shape_cast %57 : vector<4xf32> to vector<4x1xf32>
    %cst_33 = arith.constant 2.560000e+02 : f32
    %59 = vector.broadcast %cst_33 : f32 to vector<4x1xf32>
    %60 = arith.divf %58, %59 : vector<4x1xf32>
    %c0_34 = arith.constant 0 : index
    %c0_35 = arith.constant 0 : index
    %61 = vector.load %arg6[%c0_34, %c0_35] : memref<8x4xf32, #tpu.memory_space<vmem>>, vector<8x4xf32>
    %cst_36 = arith.constant dense<0.000000e+00> : vector<8x1xf32>
    %62 = tpu.matmul %61, %60, %cst_36 {dimension_numbers = #tpu.dot_dimension_numbers<[1], [0], [0], [1], [0, 0, 1, 1], [], []>} : vector<8x4xf32>, vector<4x1xf32>, vector<8x1xf32> -> vector<8x1xf32>
    %c0_37 = arith.constant 0 : index
    %c0_38 = arith.constant 0 : index
    %63 = vector.load %arg7[%c0_37, %c0_38] : memref<8x1xf32, #tpu.memory_space<vmem>>, vector<8x1xf32>
    %64 = arith.addf %62, %63 : vector<8x1xf32>
    %cst_39 = arith.constant 0.000000e+00 : f32
    %65 = vector.broadcast %cst_39 : f32 to vector<8x1xf32>
    %66 = arith.maximumf %64, %65 : vector<8x1xf32>
    %c0_40 = arith.constant 0 : index
    %c0_41 = arith.constant 0 : index
    %67 = vector.load %arg9[%c0_40, %c0_41] : memref<8x8xf32, #tpu.memory_space<vmem>>, vector<8x8xf32>
    %cst_42 = arith.constant dense<0.000000e+00> : vector<8x1xf32>
    %68 = tpu.matmul %67, %66, %cst_42 {dimension_numbers = #tpu.dot_dimension_numbers<[1], [0], [0], [1], [0, 0, 1, 1], [], []>} : vector<8x8xf32>, vector<8x1xf32>, vector<8x1xf32> -> vector<8x1xf32>
    %c0_43 = arith.constant 0 : index
    %c0_44 = arith.constant 0 : index
    %69 = vector.load %arg10[%c0_43, %c0_44] : memref<8x1xf32, #tpu.memory_space<vmem>>, vector<8x1xf32>
    %70 = arith.addf %68, %69 : vector<8x1xf32>
    %c0_45 = arith.constant 0 : index
    %c0_46 = arith.constant 0 : index
    %71 = vector.load %arg8[%c0_45, %c0_46] : memref<8x32xf32, #tpu.memory_space<vmem>>, vector<8x32xf32>
    %cst_47 = arith.constant dense<0.000000e+00> : vector<8x256xf32>
    %72 = tpu.matmul %71, %56, %cst_47 {dimension_numbers = #tpu.dot_dimension_numbers<[1], [0], [0], [1], [0, 0, 1, 1], [], []>} : vector<8x32xf32>, vector<32x256xf32>, vector<8x256xf32> -> vector<8x256xf32>
    %73 = vector.broadcast %70 : vector<8x1xf32> to vector<8x256xf32>
    %74 = arith.addf %72, %73 : vector<8x256xf32>
    %cst_48 = arith.constant 0.000000e+00 : f32
    %75 = vector.broadcast %cst_48 : f32 to vector<8x256xf32>
    %76 = arith.maximumf %74, %75 : vector<8x256xf32>
    %c0_49 = arith.constant 0 : index
    %c0_50 = arith.constant 0 : index
    %c0_51 = arith.constant 0 : index
    %77 = vector.load %arg11[%c0_49, %c0_50, %c0_51] : memref<1x8x256xf32, #tpu.memory_space<vmem>>, vector<1x8x256xf32>
    %78 = vector.shape_cast %77 : vector<1x8x256xf32> to vector<8x256xf32>
    %79 = vector.shape_cast %76 : vector<8x256xf32> to vector<1x8x256xf32>
    tpu.vector_store %arg11[%c0_49, %c0_50, %c0_51], %79 {strides = array<i32>} : memref<1x8x256xf32, #tpu.memory_space<vmem>>, vector<1x8x256xf32>,
    return
  }
  func.func @transform_0(%arg0: i32) -> (i32, i32, i32) {
    %c0_i32 = arith.constant 0 : i32
    %c0_i32_0 = arith.constant 0 : i32
    %c0_i32_1 = arith.constant 0 : i32
    return %arg0, %c0_i32, %c0_i32_0 : i32, i32, i32
  }
  func.func @transform_1(%arg0: i32) -> (i32, i32) {
    %c0_i32 = arith.constant 0 : i32
    %c0_i32_0 = arith.constant 0 : i32
    %c0_i32_1 = arith.constant 0 : i32
    return %c0_i32, %c0_i32_0 : i32, i32
  }
  func.func @transform_2(%arg0: i32) -> (i32, i32) {
    %c0_i32 = arith.constant 0 : i32
    %c0_i32_0 = arith.constant 0 : i32
    %c0_i32_1 = arith.constant 0 : i32
    return %c0_i32, %c0_i32_0 : i32, i32
  }
  func.func @transform_3(%arg0: i32) -> (i32, i32, i32) {
    %c0_i32 = arith.constant 0 : i32
    %c0_i32_0 = arith.constant 0 : i32
    %c0_i32_1 = arith.constant 0 : i32
    %c0_i32_2 = arith.constant 0 : i32
    return %c0_i32, %c0_i32_0, %c0_i32_1 : i32, i32, i32
  }
  func.func @transform_4(%arg0: i32) -> (i32, i32, i32) {
    %c0_i32 = arith.constant 0 : i32
    %c0_i32_0 = arith.constant 0 : i32
    %c0_i32_1 = arith.constant 0 : i32
    %c0_i32_2 = arith.constant 0 : i32
    return %c0_i32, %c0_i32_0, %c0_i32_1 : i32, i32, i32
  }
  func.func @transform_5(%arg0: i32) -> (i32, i32) {
    %c0_i32 = arith.constant 0 : i32
    %c0_i32_0 = arith.constant 0 : i32
    %c0_i32_1 = arith.constant 0 : i32
    return %c0_i32, %c0_i32_0 : i32, i32
  }
  func.func @transform_6(%arg0: i32) -> (i32, i32) {
    %c0_i32 = arith.constant 0 : i32
    %c0_i32_0 = arith.constant 0 : i32
    %c0_i32_1 = arith.constant 0 : i32
    return %c0_i32, %c0_i32_0 : i32, i32
  }
  func.func @transform_7(%arg0: i32) -> (i32, i32) {
    %c0_i32 = arith.constant 0 : i32
    %c0_i32_0 = arith.constant 0 : i32
    %c0_i32_1 = arith.constant 0 : i32
    return %c0_i32, %c0_i32_0 : i32, i32
  }
  func.func @transform_8(%arg0: i32) -> (i32, i32) {
    %c0_i32 = arith.constant 0 : i32
    %c0_i32_0 = arith.constant 0 : i32
    %c0_i32_1 = arith.constant 0 : i32
    return %c0_i32, %c0_i32_0 : i32, i32
  }
  func.func @transform_9(%arg0: i32) -> (i32, i32) {
    %c0_i32 = arith.constant 0 : i32
    %c0_i32_0 = arith.constant 0 : i32
    %c0_i32_1 = arith.constant 0 : i32
    return %c0_i32, %c0_i32_0 : i32, i32
  }
  func.func @transform_10(%arg0: i32) -> (i32, i32, i32) {
    %c0_i32 = arith.constant 0 : i32
    %c0_i32_0 = arith.constant 0 : i32
    %c0_i32_1 = arith.constant 0 : i32
    return %arg0, %c0_i32, %c0_i32_0 : i32, i32, i32
  }
}

</mosaic_0001>

<llo_original>
// kernel: _forward.1
$region0: #{_forward.1}
  #allocation0 [shape = 'u32[]', space=smem, size = 0x4, offset = 0x4, fixed_abs, tag = 'smem constant byte address 0x4 - core index']
  #allocation1 [shape = 'u32[72,128]{1,0:T(1,128)}', space=vmem, size = 0x9000, scoped, tag = 'internal scratch']
  %s0 = inlined_call_operand.vmem [shape: f32[2,4,256], index: 0, kind: input, shape index: {}]
  %s1 = inlined_call_operand.vmem [shape: f32[32,4], index: 1, kind: input, shape index: {}]
  %s2 = inlined_call_operand.vmem [shape: f32[32,1], index: 2, kind: input, shape index: {}]
  %s3 = inlined_call_operand.vmem [shape: f32[4,32,16], index: 3, kind: input, shape index: {}]
  %s4 = inlined_call_operand.vmem [shape: f32[4,16,256], index: 4, kind: input, shape index: {}]
  %s5 = inlined_call_operand.vmem [shape: f32[8,4], index: 5, kind: input, shape index: {}]
  %s6 = inlined_call_operand.vmem [shape: f32[8,1], index: 6, kind: input, shape index: {}]
  %s7 = inlined_call_operand.vmem [shape: f32[8,32], index: 7, kind: input, shape index: {}]
  %s8 = inlined_call_operand.vmem [shape: f32[8,8], index: 8, kind: input, shape index: {}]
  %s9 = inlined_call_operand.vmem [shape: f32[8,1], index: 9, kind: input, shape index: {}]
  %s10 = inlined_call_operand.vmem [shape: f32[2,8,256], index: 10, kind: output, shape index: {}]
  %s11 = sld [smem:[#allocation0]]
  $region73: #{_forward.1} parent=0
    _
  %s13 = ssub.s32 1, %s11
  %s14 = scalar_select 0, %s13, %s11
  loop: start=0, step=1, limit=4
  $region2: #{_forward.1} parent=0 // loop_pre_header
    _
  $region3: #{_forward.1} parent=0 // loop_header
    %s16 = sphi 0, %s20
    %p17 = scmp.ge.s32.totalorder %s16, 4
    %s26 = sphi 0, %s28
    %s29 = sphi 0, %s26
    %s30 = sphi 0, %s29
    %s46 = sphi 0, %s30
    %s50 = sphi 0, %s50
    %s52 = sphi 0, %s50
    %s53 = sphi 0, %s52
    %s67 = sphi 0, %s53
    %s71 = sphi 0, %s71
    %s73 = sphi 0, %s71
    %s74 = sphi 0, %s73
    %s88 = sphi 0, %s74
    %s92 = sphi 0, %s92
    %s94 = sphi 0, %s92
    %s95 = sphi 0, %s94
    %s109 = sphi 0, %s95
    %s113 = sphi 0, %s113
    %s115 = sphi 0, %s113
    %s116 = sphi 0, %s115
    %s130 = sphi 0, %s116
    %s134 = sphi 0, %s134
    %s136 = sphi 0, %s134
    %s137 = sphi 0, %s136
    %s151 = sphi 0, %s137
    %s155 = sphi 0, %s155
    %s157 = sphi 0, %s155
    %s158 = sphi 0, %s157
    %s172 = sphi 0, %s158
    %s176 = sphi 0, %s176
    %s178 = sphi 0, %s176
    %s179 = sphi 0, %s178
    %s193 = sphi 0, %s179
    %s197 = sphi 0, %s197
    %s199 = sphi 0, %s197
    %s200 = sphi 0, %s199
    %s214 = sphi 0, %s200
    %s218 = sphi 0, %s218
    %s220 = sphi 0, %s218
    %s221 = sphi 0, %s220
    %s235 = sphi 0, %s221
    %s241 = sphi 0, %s243
    %s244 = sphi 0, %s241
    %s245 = sphi 0, %s244
    %s261 = sphi 0, %s245
  $region4: #{_forward.1} parent=0 // loop_header_branch
    %19 = sbr.rel (%p17) target = $region8
  $region5: #{_forward.1} parent=0 // loop_body
    %s21 = ssub.s32 %s16, 1
    %s22 = ssub.s32 %s16, 2
    %s23 = sadd.s32 %s16, 1
    %s24 = ssub.s32 %s16, %s23
    %p25 = scmp.eq.s32.totalorder %s24, 0
    %s27 = sadd.s32 %s26, 1
    %s28 = scalar_select %p25, %s26, %s27
    %p31 = pneg %p25
    %p32 = scmp.eq.s32.totalorder %s16, 1
    %p33 = por %p31, %p32
    %p34 = scmp.ne.s32.totalorder %s26, %s29
    %p35 = scmp.eq.s32.totalorder %s16, 0
    %p36 = por %p34, %p35
    %p37 = scmp.ne.s32.totalorder %s26, %s29
    %p38 = scmp.eq.s32.totalorder %s21, 1
    %p39 = por %p37, %p38
    %p40 = scmp.ne.s32.totalorder %s29, %s30
    %p41 = scmp.eq.s32.totalorder %s21, 0
    %p42 = por %p40, %p41
    %p43 = scmp.ne.s32.totalorder %s29, %s30
    %p44 = scmp.eq.s32.totalorder %s22, 1
    %p45 = por %p43, %p44
    %p47 = scmp.ne.s32.totalorder %s30, %s46
    %p48 = scmp.eq.s32.totalorder %s22, 0
    %p49 = por %p47, %p48
    %s51 = sadd.s32 %s50, 1
    %p54 = scmp.eq.s32.totalorder %s16, 1
    %p55 = scmp.ne.s32.totalorder %s50, %s52
    %p56 = scmp.eq.s32.totalorder %s16, 0
    %p57 = por %p55, %p56
    %p58 = scmp.ne.s32.totalorder %s50, %s52
    %p59 = scmp.eq.s32.totalorder %s21, 1
    %p60 = por %p58, %p59
    %p61 = scmp.ne.s32.totalorder %s52, %s53
    %p62 = scmp.eq.s32.totalorder %s21, 0
    %p63 = por %p61, %p62
    %p64 = scmp.ne.s32.totalorder %s52, %s53
    %p65 = scmp.eq.s32.totalorder %s22, 1
    %p66 = por %p64, %p65
    %p68 = scmp.ne.s32.totalorder %s53, %s67
    %p69 = scmp.eq.s32.totalorder %s22, 0
    %p70 = por %p68, %p69
    %s72 = sadd.s32 %s71, 1
    %p75 = scmp.eq.s32.totalorder %s16, 1
    %p76 = scmp.ne.s32.totalorder %s71, %s73
    %p77 = scmp.eq.s32.totalorder %s16, 0
    %p78 = por %p76, %p77
    %p79 = scmp.ne.s32.totalorder %s71, %s73
    %p80 = scmp.eq.s32.totalorder %s21, 1
    %p81 = por %p79, %p80
    %p82 = scmp.ne.s32.totalorder %s73, %s74
    %p83 = scmp.eq.s32.totalorder %s21, 0
    %p84 = por %p82, %p83
    %p85 = scmp.ne.s32.totalorder %s73, %s74
    %p86 = scmp.eq.s32.totalorder %s22, 1
    %p87 = por %p85, %p86
    %p89 = scmp.ne.s32.totalorder %s74, %s88
    %p90 = scmp.eq.s32.totalorder %s22, 0
    %p91 = por %p89, %p90
    %s93 = sadd.s32 %s92, 1
    %p96 = scmp.eq.s32.totalorder %s16, 1
    %p97 = scmp.ne.s32.totalorder %s92, %s94
    %p98 = scmp.eq.s32.totalorder %s16, 0
    %p99 = por %p97, %p98
    %p100 = scmp.ne.s32.totalorder %s92, %s94
    %p101 = scmp.eq.s32.totalorder %s21, 1
    %p102 = por %p100, %p101
    %p103 = scmp.ne.s32.totalorder %s94, %s95
    %p104 = scmp.eq.s32.totalorder %s21, 0
    %p105 = por %p103, %p104
    %p106 = scmp.ne.s32.totalorder %s94, %s95
    %p107 = scmp.eq.s32.totalorder %s22, 1
    %p108 = por %p106, %p107
    %p110 = scmp.ne.s32.totalorder %s95, %s109
    %p111 = scmp.eq.s32.totalorder %s22, 0
    %p112 = por %p110, %p111
    %s114 = sadd.s32 %s113, 1
    %p117 = scmp.eq.s32.totalorder %s16, 1
    %p118 = scmp.ne.s32.totalorder %s113, %s115
    %p119 = scmp.eq.s32.totalorder %s16, 0
    %p120 = por %p118, %p119
    %p121 = scmp.ne.s32.totalorder %s113, %s115
    %p122 = scmp.eq.s32.totalorder %s21, 1
    %p123 = por %p121, %p122
    %p124 = scmp.ne.s32.totalorder %s115, %s116
    %p125 = scmp.eq.s32.totalorder %s21, 0
    %p126 = por %p124, %p125
    %p127 = scmp.ne.s32.totalorder %s115, %s116
    %p128 = scmp.eq.s32.totalorder %s22, 1
    %p129 = por %p127, %p128
    %p131 = scmp.ne.s32.totalorder %s116, %s130
    %p132 = scmp.eq.s32.totalorder %s22, 0
    %p133 = por %p131, %p132
    %s135 = sadd.s32 %s134, 1
    %p138 = scmp.eq.s32.totalorder %s16, 1
    %p139 = scmp.ne.s32.totalorder %s134, %s136
    %p140 = scmp.eq.s32.totalorder %s16, 0
    %p141 = por %p139, %p140
    %p142 = scmp.ne.s32.totalorder %s134, %s136
    %p143 = scmp.eq.s32.totalorder %s21, 1
    %p144 = por %p142, %p143
    %p145 = scmp.ne.s32.totalorder %s136, %s137
    %p146 = scmp.eq.s32.totalorder %s21, 0
    %p147 = por %p145, %p146
    %p148 = scmp.ne.s32.totalorder %s136, %s137
    %p149 = scmp.eq.s32.totalorder %s22, 1
    %p150 = por %p148, %p149
    %p152 = scmp.ne.s32.totalorder %s137, %s151
    %p153 = scmp.eq.s32.totalorder %s22, 0
    %p154 = por %p152, %p153
    %s156 = sadd.s32 %s155, 1
    %p159 = scmp.eq.s32.totalorder %s16, 1
    %p160 = scmp.ne.s32.totalorder %s155, %s157
    %p161 = scmp.eq.s32.totalorder %s16, 0
    %p162 = por %p160, %p161
    %p163 = scmp.ne.s32.totalorder %s155, %s157
    %p164 = scmp.eq.s32.totalorder %s21, 1
    %p165 = por %p163, %p164
    %p166 = scmp.ne.s32.totalorder %s157, %s158
    %p167 = scmp.eq.s32.totalorder %s21, 0
    %p168 = por %p166, %p167
    %p169 = scmp.ne.s32.totalorder %s157, %s158
    %p170 = scmp.eq.s32.totalorder %s22, 1
    %p171 = por %p169, %p170
    %p173 = scmp.ne.s32.totalorder %s158, %s172
    %p174 = scmp.eq.s32.totalorder %s22, 0
    %p175 = por %p173, %p174
    %s177 = sadd.s32 %s176, 1
    %p180 = scmp.eq.s32.totalorder %s16, 1
    %p181 = scmp.ne.s32.totalorder %s176, %s178
    %p182 = scmp.eq.s32.totalorder %s16, 0
    %p183 = por %p181, %p182
    %p184 = scmp.ne.s32.totalorder %s176, %s178
    %p185 = scmp.eq.s32.totalorder %s21, 1
    %p186 = por %p184, %p185
    %p187 = scmp.ne.s32.totalorder %s178, %s179
    %p188 = scmp.eq.s32.totalorder %s21, 0
    %p189 = por %p187, %p188
    %p190 = scmp.ne.s32.totalorder %s178, %s179
    %p191 = scmp.eq.s32.totalorder %s22, 1
    %p192 = por %p190, %p191
    %p194 = scmp.ne.s32.totalorder %s179, %s193
    %p195 = scmp.eq.s32.totalorder %s22, 0
    %p196 = por %p194, %p195
    %s198 = sadd.s32 %s197, 1
    %p201 = scmp.eq.s32.totalorder %s16, 1
    %p202 = scmp.ne.s32.totalorder %s197, %s199
    %p203 = scmp.eq.s32.totalorder %s16, 0
    %p204 = por %p202, %p203
    %p205 = scmp.ne.s32.totalorder %s197, %s199
    %p206 = scmp.eq.s32.totalorder %s21, 1
    %p207 = por %p205, %p206
    %p208 = scmp.ne.s32.totalorder %s199, %s200
    %p209 = scmp.eq.s32.totalorder %s21, 0
    %p210 = por %p208, %p209
    %p211 = scmp.ne.s32.totalorder %s199, %s200
    %p212 = scmp.eq.s32.totalorder %s22, 1
    %p213 = por %p211, %p212
    %p215 = scmp.ne.s32.totalorder %s200, %s214
    %p216 = scmp.eq.s32.totalorder %s22, 0
    %p217 = por %p215, %p216
    %s219 = sadd.s32 %s218, 1
    %p222 = scmp.eq.s32.totalorder %s16, 1
    %p223 = scmp.ne.s32.totalorder %s218, %s220
    %p224 = scmp.eq.s32.totalorder %s16, 0
    %p225 = por %p223, %p224
    %p226 = scmp.ne.s32.totalorder %s218, %s220
    %p227 = scmp.eq.s32.totalorder %s21, 1
    %p228 = por %p226, %p227
    %p229 = scmp.ne.s32.totalorder %s220, %s221
    %p230 = scmp.eq.s32.totalorder %s21, 0
    %p231 = por %p229, %p230
    %p232 = scmp.ne.s32.totalorder %s220, %s221
    %p233 = scmp.eq.s32.totalorder %s22, 1
    %p234 = por %p232, %p233
    %p236 = scmp.ne.s32.totalorder %s221, %s235
    %p237 = scmp.eq.s32.totalorder %s22, 0
    %p238 = por %p236, %p237
    %s239 = ssub.s32 %s16, %s23
    %p240 = scmp.eq.s32.totalorder %s239, 0
    %s242 = sadd.s32 %s241, 1
    %s243 = scalar_select %p240, %s241, %s242
    %p246 = pneg %p240
    %p247 = scmp.eq.s32.totalorder %s16, 1
    %p248 = por %p246, %p247
    %p249 = scmp.ne.s32.totalorder %s241, %s244
    %p250 = scmp.eq.s32.totalorder %s16, 0
    %p251 = por %p249, %p250
    %p252 = scmp.ne.s32.totalorder %s241, %s244
    %p253 = scmp.eq.s32.totalorder %s21, 1
    %p254 = por %p252, %p253
    %p255 = scmp.ne.s32.totalorder %s244, %s245
    %p256 = scmp.eq.s32.totalorder %s21, 0
    %p257 = por %p255, %p256
    %p258 = scmp.ne.s32.totalorder %s244, %s245
    %p259 = scmp.eq.s32.totalorder %s22, 1
    %p260 = por %p258, %p259
    %p262 = scmp.ne.s32.totalorder %s245, %s261
    %p263 = scmp.eq.s32.totalorder %s22, 0
    %p264 = por %p262, %p263
    %p265 = scmp.le.s32.totalorder 1, %s16
    %p266 = scmp.lt.s32.totalorder %s16, 3
    %p267 = pnand %p265, %p266
    %p268 = pneg %p267
    // Predicated region
    $region9: #{_forward.1} parent=5 // pred_check
      _
    $region10: #{_forward.1} parent=5 // pred_check_branch
      %270 = sbr.rel (%p267) target = $region12
    $region11: #{_forward.1} parent=5 // pred_region
      %s271 = ssub.s32 %s16, 1
      // Predicated region
      $region13: #{_forward.1} parent=11 // pred_check
        %p272 = pneg %p63
      $region14: #{_forward.1} parent=11 // pred_check_branch
        %274 = sbr.rel (%p272) target = $region16
      $region15: #{_forward.1} parent=11 // pred_region
        _
      $region16: #{_forward.1} parent=11 // pred_fallthru
        _
      // Predicated region
      $region17: #{_forward.1} parent=11 // pred_check
        %p275 = pneg %p84
      $region18: #{_forward.1} parent=11 // pred_check_branch
        %277 = sbr.rel (%p275) target = $region20
      $region19: #{_forward.1} parent=11 // pred_region
        _
      $region20: #{_forward.1} parent=11 // pred_fallthru
        _
      // Predicated region
      $region21: #{_forward.1} parent=11 // pred_check
        %p278 = pneg %p105
      $region22: #{_forward.1} parent=11 // pred_check_branch
        %280 = sbr.rel (%p278) target = $region24
      $region23: #{_forward.1} parent=11 // pred_region
        _
      $region24: #{_forward.1} parent=11 // pred_fallthru
        _
      // Predicated region
      $region25: #{_forward.1} parent=11 // pred_check
        %p281 = pneg %p126
      $region26: #{_forward.1} parent=11 // pred_check_branch
        %283 = sbr.rel (%p281) target = $region28
      $region27: #{_forward.1} parent=11 // pred_region
        _
      $region28: #{_forward.1} parent=11 // pred_fallthru
        _
      // Predicated region
      $region29: #{_forward.1} parent=11 // pred_check
        %p284 = pneg %p147
      $region30: #{_forward.1} parent=11 // pred_check_branch
        %286 = sbr.rel (%p284) target = $region32
      $region31: #{_forward.1} parent=11 // pred_region
        _
      $region32: #{_forward.1} parent=11 // pred_fallthru
        _
      // Predicated region
      $region33: #{_forward.1} parent=11 // pred_check
        %p287 = pneg %p168
      $region34: #{_forward.1} parent=11 // pred_check_branch
        %289 = sbr.rel (%p287) target = $region36
      $region35: #{_forward.1} parent=11 // pred_region
        _
      $region36: #{_forward.1} parent=11 // pred_fallthru
        _
      // Predicated region
      $region37: #{_forward.1} parent=11 // pred_check
        %p290 = pneg %p189
      $region38: #{_forward.1} parent=11 // pred_check_branch
        %292 = sbr.rel (%p290) target = $region40
      $region39: #{_forward.1} parent=11 // pred_region
        _
      $region40: #{_forward.1} parent=11 // pred_fallthru
        _
      // Predicated region
      $region41: #{_forward.1} parent=11 // pred_check
        %p293 = pneg %p210
      $region42: #{_forward.1} parent=11 // pred_check_branch
        %295 = sbr.rel (%p293) target = $region44
      $region43: #{_forward.1} parent=11 // pred_region
        _
      $region44: #{_forward.1} parent=11 // pred_fallthru
        _
      // Predicated region
      $region45: #{_forward.1} parent=11 // pred_check
        %p296 = pneg %p231
      $region46: #{_forward.1} parent=11 // pred_check_branch
        %298 = sbr.rel (%p296) target = $region48
      $region47: #{_forward.1} parent=11 // pred_region
        _
      $region48: #{_forward.1} parent=11 // pred_fallthru
        _
    $region12: #{_forward.1} parent=5 // pred_fallthru
      _
    %p299 = scmp.lt.s32.totalorder %s16, 2
    // Predicated region
    $region49: #{_forward.1} parent=5 // pred_check
      %p300 = pneg %p299
    $region50: #{_forward.1} parent=5 // pred_check_branch
      %302 = sbr.rel (%p300) target = $region52
    $region51: #{_forward.1} parent=5 // pred_region
      // Predicated region
      $region53: #{_forward.1} parent=51 // pred_check
        %p303 = pneg %p36
      $region54: #{_forward.1} parent=51 // pred_check_branch
        %305 = sbr.rel (%p303) target = $region56
      $region55: #{_forward.1} parent=51 // pred_region
        %p306 = scmp.lt.s32.totalorder %s16, 1
        %s307 = scalar_select %p306, %s16, 1
        %s308 = smul.addr %s307, 2
        %s309 = smul.addr %s308, 4
        %s310 = scalar_lea.vmem %s0, %s309
      $region56: #{_forward.1} parent=51 // pred_fallthru
        _
    $region52: #{_forward.1} parent=5 // pred_fallthru
      _
    %p311 = scmp.le.s32.totalorder 1, %s16
    %p312 = scmp.lt.s32.totalorder %s16, 3
    %p313 = pnand %p311, %p312
    %p314 = pneg %p313
    // Predicated region
    $region57: #{_forward.1} parent=5 // pred_check
      _
    $region58: #{_forward.1} parent=5 // pred_check_branch
      %316 = sbr.rel (%p313) target = $region60
    $region59: #{_forward.1} parent=5 // pred_region
      %s317 = ssub.s32 %s16, 1
      %p318 = scmp.lt.s32.totalorder %s21, 1
      %s319 = scalar_select %p318, %s21, 1
      %s320 = smul.addr %s319, 2
      %s321 = smul.addr %s320, 4
      %s322 = scalar_lea.vmem %s0, %s321
      %p323 = pneg %p42
      %p324 = pneg %p39
      %p325 = pneg %p63
      %p326 = pneg %p60
      %p327 = pneg %p84
      %p328 = pneg %p81
      %p329 = pneg %p105
      %p330 = pneg %p102
      %p331 = pneg %p126
      %p332 = pneg %p123
      %p333 = pneg %p147
      %p334 = pneg %p144
      %p335 = pneg %p168
      %p336 = pneg %p165
      %p337 = pneg %p189
      %p338 = pneg %p186
      %p339 = pneg %p210
      %p340 = pneg %p207
      %p341 = pneg %p231
      %p342 = pneg %p228
      %p343 = pneg %p257
      %p344 = pneg %p254
      %p345 = scmp.lt.s32.totalorder %s21, 1
      %s346 = scalar_select %p345, %s21, 1
      %s347 = smul.addr %s346, 2
      %s348 = smul.addr %s347, 8
      %s349 = scalar_lea.vmem %s10, %s348
      %p350 = scmp.lt.s32.totalorder %s21, 1
      %s351 = scalar_select %p350, %s21, 1
      %s352 = smul.addr %s351, 2
      %s353 = smul.addr %s352, 4
      %s354 = scalar_lea.vmem %s0, %s353
      %p355 = scmp.lt.s32.totalorder %s21, 1
      %s356 = scalar_select %p355, %s21, 1
      %s357 = smul.addr %s356, 2
      %s358 = smul.addr %s357, 8
      %s359 = scalar_lea.vmem %s10, %s358
      %v360 = vld [vmem:[%s354] sm:$0xff]
      %v361 = vld [vmem:[%s1] sm:$0xff]
      %v362 = vld [vmem:[%s1 + $0x8] sm:$0xff]
      %v363 = vld [vmem:[%s1 + $0x10] sm:$0xff]
      %v364 = vld [vmem:[%s1 + $0x18] sm:$0xff]
      %v365 = vld [vmem:[%s2] sm:$0xff]
      %v366 = vld [vmem:[%s2 + $0x8] sm:$0xff]
      %v367 = vld [vmem:[%s2 + $0x10] sm:$0xff]
      %v368 = vld [vmem:[%s2 + $0x18] sm:$0xff]
      %370 = vset.pattern.permute.xlu0 0
      %371 = vperm.xlu0 %370, %v365
      %v372 = vpop.permute.xlu0 %371
      %375 = vset.pattern.permute.xlu0 0
      %376 = vperm.xlu0 %375, %v366
      %v377 = vpop.permute.xlu0 %376
      %380 = vset.pattern.permute.xlu0 0
      %381 = vperm.xlu0 %380, %v367
      %v382 = vpop.permute.xlu0 %381
      %385 = vset.pattern.permute.xlu0 0
      %386 = vperm.xlu0 %385, %v368
      %v387 = vpop.permute.xlu0 %386
      %390 = vst [vmem:[#allocation1] ss:$2 sm:$0xff] %v360
      %v391 = vld.sshfl [vmem:[#allocation1] sm:$0xff pattern:$0x75316420]
      %v392 = vld.sshfl [vmem:[#allocation1 + $0x8] sm:$0xff pattern:$0x75316420]
      %vm393 = vcmask 31744
      %v395 = vsel %vm393, %v361, 0
      %v398 = vsel %vm393, %v362, 0
      %v401 = vsel %vm393, %v363, 0
      %v404 = vsel %vm393, %v364, 0
      %vm406 = vcmask 1043456
      %v407 = vsel %vm406, %v391, 0
      %v409 = vsel %vm406, %v392, 0
      %411 = vmatpush.msra.mxu0 0.0
      %412 = vmatpush.msra.mxu0 0.0
      %413 = vmatpush.msra.mxu0 0.0
      %414 = vmatpush.msra.mxu0 0.0
      %415 = vmatpush.msra.mxu0 0.0
      %416 = vmatpush.msra.mxu0 0.0
      %417 = vmatpush.msra.mxu0 0.0
      %418 = vmatpush.msra.mxu0 0.0
      %419 = vmatpush.msra.mxu0 0.0
      %420 = vmatpush.msra.mxu0 0.0
      %421 = vmatpush.msra.mxu0 0.0
      %422 = vmatpush.msra.mxu0 0.0
      %423 = vmatpush.msra.mxu0 0.0
      %424 = vmatpush.msra.mxu0 0.0
      %425 = vmatpush.msra.mxu0 0.0
      %426 = vmatpush.msra.mxu0 %v407
      %427 = vmatmul.f32.gmra.mxu0 %v395
      %v428 = vpop.f32.mrf.mxu0
      %v429 = vadd.f32 %v372, %v428
      %430 = vmatmul.f32.gmra.mxu0 %v398
      %v431 = vpop.f32.mrf.mxu0
      %v432 = vadd.f32 %v377, %v431
      %433 = vmatmul.f32.gmra.mxu0 %v401
      %v434 = vpop.f32.mrf.mxu0
      %v435 = vadd.f32 %v382, %v434
      %436 = vmatmul.f32.gmra.mxu0 %v404
      %v437 = vpop.f32.mrf.mxu0
      %v438 = vadd.f32 %v387, %v437
      %439 = vdwg.mxu0
      %440 = vmatpush.msra.mxu0 0.0
      %441 = vmatpush.msra.mxu0 0.0
      %442 = vmatpush.msra.mxu0 0.0
      %443 = vmatpush.msra.mxu0 0.0
      %444 = vmatpush.msra.mxu0 0.0
      %445 = vmatpush.msra.mxu0 0.0
      %446 = vmatpush.msra.mxu0 0.0
      %447 = vmatpush.msra.mxu0 0.0
      %448 = vmatpush.msra.mxu0 0.0
      %449 = vmatpush.msra.mxu0 0.0
      %450 = vmatpush.msra.mxu0 0.0
      %451 = vmatpush.msra.mxu0 0.0
      %452 = vmatpush.msra.mxu0 0.0
      %453 = vmatpush.msra.mxu0 0.0
      %454 = vmatpush.msra.mxu0 0.0
      %455 = vmatpush.msra.mxu0 %v409
      %456 = vmatmul.f32.gmra.mxu0 %v395
      %v457 = vpop.f32.mrf.mxu0
      %v458 = vadd.f32 %v372, %v457
      %459 = vmatmul.f32.gmra.mxu0 %v398
      %v460 = vpop.f32.mrf.mxu0
      %v461 = vadd.f32 %v377, %v460
      %462 = vmatmul.f32.gmra.mxu0 %v401
      %v463 = vpop.f32.mrf.mxu0
      %v464 = vadd.f32 %v382, %v463
      %465 = vmatmul.f32.gmra.mxu0 %v404
      %v466 = vpop.f32.mrf.mxu0
      %v467 = vadd.f32 %v387, %v466
      %468 = vdwg.mxu0
      %469 = vst [vmem:[#allocation1] ss:$2 sm:$0xff] %v360
      %v470 = vld.sshfl [vmem:[#allocation1] sm:$0xff pattern:$0x75316420]
      %v471 = vld.sshfl [vmem:[#allocation1 + $0x8] sm:$0xff pattern:$0x75316420]
      %474 = vrot.lane.b32.xlu0 %v470, 102
      %v475 = vpop.permute.xlu0 %474
      %476 = vrot.lane.b32.xlu0 %v471, 102
      %v477 = vpop.permute.xlu0 %476
      %v478 = vlaneseq
      %v479 = vand.u32 %v478, 127
      %vm480 = vcmp.lt.s32.totalorder %v479, 102
      %v481 = vsel %vm480, %v475, %v477
      %v482 = vsel %vm480, %v477, %v475
      %483 = vst [vmem:[#allocation1] ss:$2 sm:$0xff] %v360
      %v484 = vld.sshfl [vmem:[#allocation1] sm:$0xff pattern:$0x75316420]
      %v485 = vld.sshfl [vmem:[#allocation1 + $0x8] sm:$0xff pattern:$0x75316420]
      %488 = vrot.lane.b32.xlu0 %v484, 96
      %v489 = vpop.permute.xlu0 %488
      %490 = vrot.lane.b32.xlu0 %v485, 96
      %v491 = vpop.permute.xlu0 %490
      %vm492 = vcmp.lt.s32.totalorder %v479, 96
      %v493 = vsel %vm492, %v489, %v491
      %v494 = vsel %vm492, %v491, %v489
      %495 = vst [vmem:[#allocation1] ss:$2 sm:$0xff] %v360
      %v496 = vld.sshfl [vmem:[#allocation1] sm:$0xff pattern:$0x75316420]
      %v497 = vld.sshfl [vmem:[#allocation1 + $0x8] sm:$0xff pattern:$0x75316420]
      %500 = vrot.lane.b32.xlu0 %v496, 90
      %v501 = vpop.permute.xlu0 %500
      %502 = vrot.lane.b32.xlu0 %v497, 90
      %v503 = vpop.permute.xlu0 %502
      %vm504 = vcmp.lt.s32.totalorder %v479, 90
      %v505 = vsel %vm504, %v501, %v503
      %v506 = vsel %vm504, %v503, %v501
      %507 = vst [vmem:[#allocation1] ss:$2 sm:$0xff] %v360
      %v508 = vld.sshfl [vmem:[#allocation1] sm:$0xff pattern:$0x75316420]
      %v509 = vld.sshfl [vmem:[#allocation1 + $0x8] sm:$0xff pattern:$0x75316420]
      %512 = vrot.lane.b32.xlu0 %v508, 6
      %v513 = vpop.permute.xlu0 %512
      %514 = vrot.lane.b32.xlu0 %v509, 6
      %v515 = vpop.permute.xlu0 %514
      %vm516 = vcmp.lt.s32.totalorder %v479, 6
      %v517 = vsel %vm516, %v513, %v515
      %v518 = vsel %vm516, %v515, %v513
      %v521 = vrot.slane %v494, 4
      %v522 = vrot.slane %v493, 4
      %v527 = vrot.slane %v518, 4
      %v528 = vrot.slane %v517, 4
      %v531 = vsel %vm406, %v482, %v521
      %v532 = vsel %vm406, %v481, %v522
      %v533 = vsel %vm406, %v506, %v527
      %v534 = vsel %vm406, %v505, %v528
      %v535 = vld [vmem:[%s4] sm:$0xff]
      %v536 = vld [vmem:[%s4 + $0x8] sm:$0xff]
      %v537 = vld [vmem:[%s4 + $0x10] sm:$0xff]
      %v538 = vld [vmem:[%s4 + $0x18] sm:$0xff]
      %v539 = vmul.f32 %v531, %v535
      %v540 = vmul.f32 %v532, %v536
      %v541 = vmul.f32 %v533, %v537
      %v542 = vmul.f32 %v534, %v538
      %v543 = vld [vmem:[%s3] sm:$0xff]
      %v544 = vld [vmem:[%s3 + $0x8] sm:$0xff]
      %v545 = vld [vmem:[%s3 + $0x10] sm:$0xff]
      %v546 = vld [vmem:[%s3 + $0x18] sm:$0xff]
      %vm547 = vcmask 130048
      %v549 = vsel %vm547, %v543, 0
      %v552 = vsel %vm547, %v544, 0
      %v555 = vsel %vm547, %v545, 0
      %v558 = vsel %vm547, %v546, 0
      %560 = vmatpush.msra.mxu0 0.0
      %561 = vmatpush.msra.mxu0 0.0
      %562 = vmatpush.msra.mxu0 0.0
      %563 = vmatpush.msra.mxu0 0.0
      %564 = vmatpush.msra.mxu0 0.0
      %565 = vmatpush.msra.mxu0 0.0
      %566 = vmatpush.msra.mxu0 0.0
      %567 = vmatpush.msra.mxu0 0.0
      %568 = vmatpush.msra.mxu0 0.0
      %569 = vmatpush.msra.mxu0 0.0
      %570 = vmatpush.msra.mxu0 0.0
      %571 = vmatpush.msra.mxu0 0.0
      %572 = vmatpush.msra.mxu0 0.0
      %573 = vmatpush.msra.mxu0 0.0
      %574 = vmatpush.msra.mxu0 %v541
      %575 = vmatpush.msra.mxu0 %v539
      %576 = vmatmul.f32.gmra.mxu0 %v549
      %v577 = vpop.f32.mrf.mxu0
      %v578 = vadd.f32 0.0, %v577
      %579 = vmatmul.f32.gmra.mxu0 %v552
      %v580 = vpop.f32.mrf.mxu0
      %v581 = vadd.f32 0.0, %v580
      %582 = vmatmul.f32.gmra.mxu0 %v555
      %v583 = vpop.f32.mrf.mxu0
      %v584 = vadd.f32 0.0, %v583
      %585 = vmatmul.f32.gmra.mxu0 %v558
      %v586 = vpop.f32.mrf.mxu0
      %v587 = vadd.f32 0.0, %v586
      %588 = vdwg.mxu0
      %589 = vmatpush.msra.mxu0 0.0
      %590 = vmatpush.msra.mxu0 0.0
      %591 = vmatpush.msra.mxu0 0.0
      %592 = vmatpush.msra.mxu0 0.0
      %593 = vmatpush.msra.mxu0 0.0
      %594 = vmatpush.msra.mxu0 0.0
      %595 = vmatpush.msra.mxu0 0.0
      %596 = vmatpush.msra.mxu0 0.0
      %597 = vmatpush.msra.mxu0 0.0
      %598 = vmatpush.msra.mxu0 0.0
      %599 = vmatpush.msra.mxu0 0.0
      %600 = vmatpush.msra.mxu0 0.0
      %601 = vmatpush.msra.mxu0 0.0
      %602 = vmatpush.msra.mxu0 0.0
      %603 = vmatpush.msra.mxu0 %v542
      %604 = vmatpush.msra.mxu0 %v540
      %605 = vmatmul.f32.gmra.mxu0 %v549
      %v606 = vpop.f32.mrf.mxu0
      %v607 = vadd.f32 0.0, %v606
      %608 = vmatmul.f32.gmra.mxu0 %v552
      %v609 = vpop.f32.mrf.mxu0
      %v610 = vadd.f32 0.0, %v609
      %611 = vmatmul.f32.gmra.mxu0 %v555
      %v612 = vpop.f32.mrf.mxu0
      %v613 = vadd.f32 0.0, %v612
      %614 = vmatmul.f32.gmra.mxu0 %v558
      %v615 = vpop.f32.mrf.mxu0
      %v616 = vadd.f32 0.0, %v615
      %617 = vdwg.mxu0
      %v618 = vadd.f32 %v429, %v578
      %v619 = vadd.f32 %v458, %v607
      %v620 = vadd.f32 %v432, %v581
      %v621 = vadd.f32 %v461, %v610
      %v622 = vadd.f32 %v435, %v584
      %v623 = vadd.f32 %v464, %v613
      %v624 = vadd.f32 %v438, %v587
      %v625 = vadd.f32 %v467, %v616
      %626 = vst [vmem:[#allocation1] ss:$2 sm:$0xff] %v360
      %v627 = vld.sshfl [vmem:[#allocation1] sm:$0xff pattern:$0x75316420]
      %v628 = vld.sshfl [vmem:[#allocation1 + $0x8] sm:$0xff pattern:$0x75316420]
      %631 = vrot.lane.b32.xlu0 %v627, 122
      %v632 = vpop.permute.xlu0 %631
      %633 = vrot.lane.b32.xlu0 %v628, 122
      %v634 = vpop.permute.xlu0 %633
      %vm635 = vcmp.lt.s32.totalorder %v479, 122
      %v636 = vsel %vm635, %v632, %v634
      %v637 = vsel %vm635, %v634, %v632
      %638 = vst [vmem:[#allocation1] ss:$2 sm:$0xff] %v360
      %v639 = vld.sshfl [vmem:[#allocation1] sm:$0xff pattern:$0x75316420]
      %v640 = vld.sshfl [vmem:[#allocation1 + $0x8] sm:$0xff pattern:$0x75316420]
      %643 = vrot.lane.b32.xlu0 %v639, 38
      %v644 = vpop.permute.xlu0 %643
      %645 = vrot.lane.b32.xlu0 %v640, 38
      %v646 = vpop.permute.xlu0 %645
      %vm647 = vcmp.lt.s32.totalorder %v479, 38
      %v648 = vsel %vm647, %v644, %v646
      %v649 = vsel %vm647, %v646, %v644
      %650 = vst [vmem:[#allocation1] ss:$2 sm:$0xff] %v360
      %v651 = vld.sshfl [vmem:[#allocation1] sm:$0xff pattern:$0x75316420]
      %v652 = vld.sshfl [vmem:[#allocation1 + $0x8] sm:$0xff pattern:$0x75316420]
      %655 = vrot.lane.b32.xlu0 %v651, 32
      %v656 = vpop.permute.xlu0 %655
      %657 = vrot.lane.b32.xlu0 %v652, 32
      %v658 = vpop.permute.xlu0 %657
      %vm659 = vcmp.lt.s32.totalorder %v479, 32
      %v660 = vsel %vm659, %v656, %v658
      %v661 = vsel %vm659, %v658, %v656
      %662 = vst [vmem:[#allocation1] ss:$2 sm:$0xff] %v360
      %v663 = vld.sshfl [vmem:[#allocation1] sm:$0xff pattern:$0x75316420]
      %v664 = vld.sshfl [vmem:[#allocation1 + $0x8] sm:$0xff pattern:$0x75316420]
      %667 = vrot.lane.b32.xlu0 %v663, 26
      %v668 = vpop.permute.xlu0 %667
      %669 = vrot.lane.b32.xlu0 %v664, 26
      %v670 = vpop.permute.xlu0 %669
      %vm671 = vcmp.lt.s32.totalorder %v479, 26
      %v672 = vsel %vm671, %v668, %v670
      %v673 = vsel %vm671, %v670, %v668
      %v676 = vrot.slane %v648, 4
      %v677 = vrot.slane %v649, 4
      %v682 = vrot.slane %v672, 4
      %v683 = vrot.slane %v673, 4
      %v686 = vsel %vm406, %v636, %v676
      %v687 = vsel %vm406, %v637, %v677
      %v688 = vsel %vm406, %v660, %v682
      %v689 = vsel %vm406, %v661, %v683
      %s690 = scalar_lea.vmem %s4, 32
      %v691 = vld [vmem:[%s690] sm:$0xff]
      %v692 = vld [vmem:[%s690 + $0x8] sm:$0xff]
      %v693 = vld [vmem:[%s690 + $0x10] sm:$0xff]
      %v694 = vld [vmem:[%s690 + $0x18] sm:$0xff]
      %v695 = vmul.f32 %v686, %v691
      %v696 = vmul.f32 %v687, %v692
      %v697 = vmul.f32 %v688, %v693
      %v698 = vmul.f32 %v689, %v694
      %s699 = scalar_lea.vmem %s3, 32
      %v700 = vld [vmem:[%s699] sm:$0xff]
      %v701 = vld [vmem:[%s699 + $0x8] sm:$0xff]
      %v702 = vld [vmem:[%s699 + $0x10] sm:$0xff]
      %v703 = vld [vmem:[%s699 + $0x18] sm:$0xff]
      %v705 = vsel %vm547, %v700, 0
      %v708 = vsel %vm547, %v701, 0
      %v711 = vsel %vm547, %v702, 0
      %v714 = vsel %vm547, %v703, 0
      %716 = vmatpush.msra.mxu0 0.0
      %717 = vmatpush.msra.mxu0 0.0
      %718 = vmatpush.msra.mxu0 0.0
      %719 = vmatpush.msra.mxu0 0.0
      %720 = vmatpush.msra.mxu0 0.0
      %721 = vmatpush.msra.mxu0 0.0
      %722 = vmatpush.msra.mxu0 0.0
      %723 = vmatpush.msra.mxu0 0.0
      %724 = vmatpush.msra.mxu0 0.0
      %725 = vmatpush.msra.mxu0 0.0
      %726 = vmatpush.msra.mxu0 0.0
      %727 = vmatpush.msra.mxu0 0.0
      %728 = vmatpush.msra.mxu0 0.0
      %729 = vmatpush.msra.mxu0 0.0
      %730 = vmatpush.msra.mxu0 %v697
      %731 = vmatpush.msra.mxu0 %v695
      %732 = vmatmul.f32.gmra.mxu0 %v705
      %v733 = vpop.f32.mrf.mxu0
      %v734 = vadd.f32 0.0, %v733
      %735 = vmatmul.f32.gmra.mxu0 %v708
      %v736 = vpop.f32.mrf.mxu0
      %v737 = vadd.f32 0.0, %v736
      %738 = vmatmul.f32.gmra.mxu0 %v711
      %v739 = vpop.f32.mrf.mxu0
      %v740 = vadd.f32 0.0, %v739
      %741 = vmatmul.f32.gmra.mxu0 %v714
      %v742 = vpop.f32.mrf.mxu0
      %v743 = vadd.f32 0.0, %v742
      %744 = vdwg.mxu0
      %745 = vmatpush.msra.mxu0 0.0
      %746 = vmatpush.msra.mxu0 0.0
      %747 = vmatpush.msra.mxu0 0.0
      %748 = vmatpush.msra.mxu0 0.0
      %749 = vmatpush.msra.mxu0 0.0
      %750 = vmatpush.msra.mxu0 0.0
      %751 = vmatpush.msra.mxu0 0.0
      %752 = vmatpush.msra.mxu0 0.0
      %753 = vmatpush.msra.mxu0 0.0
      %754 = vmatpush.msra.mxu0 0.0
      %755 = vmatpush.msra.mxu0 0.0
      %756 = vmatpush.msra.mxu0 0.0
      %757 = vmatpush.msra.mxu0 0.0
      %758 = vmatpush.msra.mxu0 0.0
      %759 = vmatpush.msra.mxu0 %v698
      %760 = vmatpush.msra.mxu0 %v696
      %761 = vmatmul.f32.gmra.mxu0 %v705
      %v762 = vpop.f32.mrf.mxu0
      %v763 = vadd.f32 0.0, %v762
      %764 = vmatmul.f32.gmra.mxu0 %v708
      %v765 = vpop.f32.mrf.mxu0
      %v766 = vadd.f32 0.0, %v765
      %767 = vmatmul.f32.gmra.mxu0 %v711
      %v768 = vpop.f32.mrf.mxu0
      %v769 = vadd.f32 0.0, %v768
      %770 = vmatmul.f32.gmra.mxu0 %v714
      %v771 = vpop.f32.mrf.mxu0
      %v772 = vadd.f32 0.0, %v771
      %773 = vdwg.mxu0
      %v774 = vadd.f32 %v618, %v734
      %v775 = vadd.f32 %v619, %v763
      %v776 = vadd.f32 %v620, %v737
      %v777 = vadd.f32 %v621, %v766
      %v778 = vadd.f32 %v622, %v740
      %v779 = vadd.f32 %v623, %v769
      %v780 = vadd.f32 %v624, %v743
      %v781 = vadd.f32 %v625, %v772
      %782 = vst [vmem:[#allocation1] ss:$2 sm:$0xff] %v360
      %v783 = vld.sshfl [vmem:[#allocation1] sm:$0xff pattern:$0x75316420]
      %v784 = vld.sshfl [vmem:[#allocation1 + $0x8] sm:$0xff pattern:$0x75316420]
      %787 = vrot.lane.b32.xlu0 %v783, 76
      %v788 = vpop.permute.xlu0 %787
      %789 = vrot.lane.b32.xlu0 %v784, 76
      %v790 = vpop.permute.xlu0 %789
      %vm791 = vcmp.lt.s32.totalorder %v479, 76
      %v792 = vsel %vm791, %v788, %v790
      %v793 = vsel %vm791, %v790, %v788
      %794 = vst [vmem:[#allocation1] ss:$2 sm:$0xff] %v360
      %v795 = vld.sshfl [vmem:[#allocation1] sm:$0xff pattern:$0x75316420]
      %v796 = vld.sshfl [vmem:[#allocation1 + $0x8] sm:$0xff pattern:$0x75316420]
      %799 = vrot.lane.b32.xlu0 %v795, 64
      %v800 = vpop.permute.xlu0 %799
      %801 = vrot.lane.b32.xlu0 %v796, 64
      %v802 = vpop.permute.xlu0 %801
      %vm803 = vcmp.lt.s32.totalorder %v479, 64
      %v804 = vsel %vm803, %v800, %v802
      %v805 = vsel %vm803, %v802, %v800
      %806 = vst [vmem:[#allocation1] ss:$2 sm:$0xff] %v360
      %v807 = vld.sshfl [vmem:[#allocation1] sm:$0xff pattern:$0x75316420]
      %v808 = vld.sshfl [vmem:[#allocation1 + $0x8] sm:$0xff pattern:$0x75316420]
      %811 = vrot.lane.b32.xlu0 %v807, 52
      %v812 = vpop.permute.xlu0 %811
      %813 = vrot.lane.b32.xlu0 %v808, 52
      %v814 = vpop.permute.xlu0 %813
      %vm815 = vcmp.lt.s32.totalorder %v479, 52
      %v816 = vsel %vm815, %v812, %v814
      %v817 = vsel %vm815, %v814, %v812
      %818 = vst [vmem:[#allocation1] ss:$2 sm:$0xff] %v360
      %v819 = vld.sshfl [vmem:[#allocation1] sm:$0xff pattern:$0x75316420]
      %v820 = vld.sshfl [vmem:[#allocation1 + $0x8] sm:$0xff pattern:$0x75316420]
      %823 = vrot.lane.b32.xlu0 %v819, 12
      %v824 = vpop.permute.xlu0 %823
      %825 = vrot.lane.b32.xlu0 %v820, 12
      %v826 = vpop.permute.xlu0 %825
      %vm827 = vcmp.lt.s32.totalorder %v479, 12
      %v828 = vsel %vm827, %v824, %v826
      %v829 = vsel %vm827, %v826, %v824
      %v832 = vrot.slane %v804, 4
      %v833 = vrot.slane %v805, 4
      %v838 = vrot.slane %v829, 4
      %v839 = vrot.slane %v828, 4
      %v842 = vsel %vm406, %v792, %v832
      %v843 = vsel %vm406, %v793, %v833
      %v844 = vsel %vm406, %v816, %v838
      %v845 = vsel %vm406, %v817, %v839
      %s846 = scalar_lea.vmem %s4, 64
      %v847 = vld [vmem:[%s846] sm:$0xff]
      %v848 = vld [vmem:[%s846 + $0x8] sm:$0xff]
      %v849 = vld [vmem:[%s846 + $0x10] sm:$0xff]
      %v850 = vld [vmem:[%s846 + $0x18] sm:$0xff]
      %v851 = vmul.f32 %v842, %v847
      %v852 = vmul.f32 %v843, %v848
      %v853 = vmul.f32 %v844, %v849
      %v854 = vmul.f32 %v845, %v850
      %s855 = scalar_lea.vmem %s3, 64
      %v856 = vld [vmem:[%s855] sm:$0xff]
      %v857 = vld [vmem:[%s855 + $0x8] sm:$0xff]
      %v858 = vld [vmem:[%s855 + $0x10] sm:$0xff]
      %v859 = vld [vmem:[%s855 + $0x18] sm:$0xff]
      %v861 = vsel %vm547, %v856, 0
      %v864 = vsel %vm547, %v857, 0
      %v867 = vsel %vm547, %v858, 0
      %v870 = vsel %vm547, %v859, 0
      %872 = vmatpush.msra.mxu0 0.0
      %873 = vmatpush.msra.mxu0 0.0
      %874 = vmatpush.msra.mxu0 0.0
      %875 = vmatpush.msra.mxu0 0.0
      %876 = vmatpush.msra.mxu0 0.0
      %877 = vmatpush.msra.mxu0 0.0
      %878 = vmatpush.msra.mxu0 0.0
      %879 = vmatpush.msra.mxu0 0.0
      %880 = vmatpush.msra.mxu0 0.0
      %881 = vmatpush.msra.mxu0 0.0
      %882 = vmatpush.msra.mxu0 0.0
      %883 = vmatpush.msra.mxu0 0.0
      %884 = vmatpush.msra.mxu0 0.0
      %885 = vmatpush.msra.mxu0 0.0
      %886 = vmatpush.msra.mxu0 %v853
      %887 = vmatpush.msra.mxu0 %v851
      %888 = vmatmul.f32.gmra.mxu0 %v861
      %v889 = vpop.f32.mrf.mxu0
      %v890 = vadd.f32 0.0, %v889
      %891 = vmatmul.f32.gmra.mxu0 %v864
      %v892 = vpop.f32.mrf.mxu0
      %v893 = vadd.f32 0.0, %v892
      %894 = vmatmul.f32.gmra.mxu0 %v867
      %v895 = vpop.f32.mrf.mxu0
      %v896 = vadd.f32 0.0, %v895
      %897 = vmatmul.f32.gmra.mxu0 %v870
      %v898 = vpop.f32.mrf.mxu0
      %v899 = vadd.f32 0.0, %v898
      %900 = vdwg.mxu0
      %901 = vmatpush.msra.mxu0 0.0
      %902 = vmatpush.msra.mxu0 0.0
      %903 = vmatpush.msra.mxu0 0.0
      %904 = vmatpush.msra.mxu0 0.0
      %905 = vmatpush.msra.mxu0 0.0
      %906 = vmatpush.msra.mxu0 0.0
      %907 = vmatpush.msra.mxu0 0.0
      %908 = vmatpush.msra.mxu0 0.0
      %909 = vmatpush.msra.mxu0 0.0
      %910 = vmatpush.msra.mxu0 0.0
      %911 = vmatpush.msra.mxu0 0.0
      %912 = vmatpush.msra.mxu0 0.0
      %913 = vmatpush.msra.mxu0 0.0
      %914 = vmatpush.msra.mxu0 0.0
      %915 = vmatpush.msra.mxu0 %v854
      %916 = vmatpush.msra.mxu0 %v852
      %917 = vmatmul.f32.gmra.mxu0 %v861
      %v918 = vpop.f32.mrf.mxu0
      %v919 = vadd.f32 0.0, %v918
      %920 = vmatmul.f32.gmra.mxu0 %v864
      %v921 = vpop.f32.mrf.mxu0
      %v922 = vadd.f32 0.0, %v921
      %923 = vmatmul.f32.gmra.mxu0 %v867
      %v924 = vpop.f32.mrf.mxu0
      %v925 = vadd.f32 0.0, %v924
      %926 = vmatmul.f32.gmra.mxu0 %v870
      %v927 = vpop.f32.mrf.mxu0
      %v928 = vadd.f32 0.0, %v927
      %929 = vdwg.mxu0
      %v930 = vadd.f32 %v774, %v890
      %v931 = vadd.f32 %v775, %v919
      %v932 = vadd.f32 %v776, %v893
      %v933 = vadd.f32 %v777, %v922
      %v934 = vadd.f32 %v778, %v896
      %v935 = vadd.f32 %v779, %v925
      %v936 = vadd.f32 %v780, %v899
      %v937 = vadd.f32 %v781, %v928
      %938 = vst [vmem:[#allocation1] ss:$2 sm:$0xff] %v360
      %v939 = vld.sshfl [vmem:[#allocation1] sm:$0xff pattern:$0x75316420]
      %v940 = vld.sshfl [vmem:[#allocation1 + $0x8] sm:$0xff pattern:$0x75316420]
      %943 = vrot.lane.b32.xlu0 %v939, 116
      %v944 = vpop.permute.xlu0 %943
      %945 = vrot.lane.b32.xlu0 %v940, 116
      %v946 = vpop.permute.xlu0 %945
      %vm947 = vcmp.lt.s32.totalorder %v479, 116
      %v948 = vsel %vm947, %v944, %v946
      %v949 = vsel %vm947, %v946, %v944
      %950 = vst [vmem:[#allocation1] ss:$2 sm:$0xff] %v360
      %v951 = vld.sshfl [vmem:[#allocation1] sm:$0xff pattern:$0x75316420]
      %v952 = vld.sshfl [vmem:[#allocation1 + $0x8] sm:$0xff pattern:$0x75316420]
      %955 = vrot.lane.b32.xlu0 %v951, 76
      %v956 = vpop.permute.xlu0 %955
      %957 = vrot.lane.b32.xlu0 %v952, 76
      %v958 = vpop.permute.xlu0 %957
      %v959 = vsel %vm791, %v956, %v958
      %v960 = vsel %vm791, %v958, %v956
      %961 = vst [vmem:[#allocation1] ss:$2 sm:$0xff] %v360
      %v962 = vld.sshfl [vmem:[#allocation1] sm:$0xff pattern:$0x75316420]
      %v963 = vld.sshfl [vmem:[#allocation1 + $0x8] sm:$0xff pattern:$0x75316420]
      %966 = vrot.lane.b32.xlu0 %v962, 64
      %v967 = vpop.permute.xlu0 %966
      %968 = vrot.lane.b32.xlu0 %v963, 64
      %v969 = vpop.permute.xlu0 %968
      %v970 = vsel %vm803, %v967, %v969
      %v971 = vsel %vm803, %v969, %v967
      %972 = vst [vmem:[#allocation1] ss:$2 sm:$0xff] %v360
      %v973 = vld.sshfl [vmem:[#allocation1] sm:$0xff pattern:$0x75316420]
      %v974 = vld.sshfl [vmem:[#allocation1 + $0x8] sm:$0xff pattern:$0x75316420]
      %977 = vrot.lane.b32.xlu0 %v973, 52
      %v978 = vpop.permute.xlu0 %977
      %979 = vrot.lane.b32.xlu0 %v974, 52
      %v980 = vpop.permute.xlu0 %979
      %v981 = vsel %vm815, %v978, %v980
      %v982 = vsel %vm815, %v980, %v978
      %v985 = vrot.slane %v960, 4
      %v986 = vrot.slane %v959, 4
      %v991 = vrot.slane %v982, 4
      %v992 = vrot.slane %v981, 4
      %v995 = vsel %vm406, %v948, %v985
      %v996 = vsel %vm406, %v949, %v986
      %v997 = vsel %vm406, %v971, %v991
      %v998 = vsel %vm406, %v970, %v992
      %s999 = scalar_lea.vmem %s4, 96
      %v1000 = vld [vmem:[%s999] sm:$0xff]
      %v1001 = vld [vmem:[%s999 + $0x8] sm:$0xff]
      %v1002 = vld [vmem:[%s999 + $0x10] sm:$0xff]
      %v1003 = vld [vmem:[%s999 + $0x18] sm:$0xff]
      %v1004 = vmul.f32 %v995, %v1000
      %v1005 = vmul.f32 %v996, %v1001
      %v1006 = vmul.f32 %v997, %v1002
      %v1007 = vmul.f32 %v998, %v1003
      %s1008 = scalar_lea.vmem %s3, 96
      %v1009 = vld [vmem:[%s1008] sm:$0xff]
      %v1010 = vld [vmem:[%s1008 + $0x8] sm:$0xff]
      %v1011 = vld [vmem:[%s1008 + $0x10] sm:$0xff]
      %v1012 = vld [vmem:[%s1008 + $0x18] sm:$0xff]
      %v1014 = vsel %vm547, %v1009, 0
      %v1017 = vsel %vm547, %v1010, 0
      %v1020 = vsel %vm547, %v1011, 0
      %v1023 = vsel %vm547, %v1012, 0
      %1025 = vmatpush.msra.mxu0 0.0
      %1026 = vmatpush.msra.mxu0 0.0
      %1027 = vmatpush.msra.mxu0 0.0
      %1028 = vmatpush.msra.mxu0 0.0
      %1029 = vmatpush.msra.mxu0 0.0
      %1030 = vmatpush.msra.mxu0 0.0
      %1031 = vmatpush.msra.mxu0 0.0
      %1032 = vmatpush.msra.mxu0 0.0
      %1033 = vmatpush.msra.mxu0 0.0
      %1034 = vmatpush.msra.mxu0 0.0
      %1035 = vmatpush.msra.mxu0 0.0
      %1036 = vmatpush.msra.mxu0 0.0
      %1037 = vmatpush.msra.mxu0 0.0
      %1038 = vmatpush.msra.mxu0 0.0
      %1039 = vmatpush.msra.mxu0 %v1006
      %1040 = vmatpush.msra.mxu0 %v1004
      %1041 = vmatmul.f32.gmra.mxu0 %v1014
      %v1042 = vpop.f32.mrf.mxu0
      %v1043 = vadd.f32 0.0, %v1042
      %1044 = vmatmul.f32.gmra.mxu0 %v1017
      %v1045 = vpop.f32.mrf.mxu0
      %v1046 = vadd.f32 0.0, %v1045
      %1047 = vmatmul.f32.gmra.mxu0 %v1020
      %v1048 = vpop.f32.mrf.mxu0
      %v1049 = vadd.f32 0.0, %v1048
      %1050 = vmatmul.f32.gmra.mxu0 %v1023
      %v1051 = vpop.f32.mrf.mxu0
      %v1052 = vadd.f32 0.0, %v1051
      %1053 = vdwg.mxu0
      %1054 = vmatpush.msra.mxu0 0.0
      %1055 = vmatpush.msra.mxu0 0.0
      %1056 = vmatpush.msra.mxu0 0.0
      %1057 = vmatpush.msra.mxu0 0.0
      %1058 = vmatpush.msra.mxu0 0.0
      %1059 = vmatpush.msra.mxu0 0.0
      %1060 = vmatpush.msra.mxu0 0.0
      %1061 = vmatpush.msra.mxu0 0.0
      %1062 = vmatpush.msra.mxu0 0.0
      %1063 = vmatpush.msra.mxu0 0.0
      %1064 = vmatpush.msra.mxu0 0.0
      %1065 = vmatpush.msra.mxu0 0.0
      %1066 = vmatpush.msra.mxu0 0.0
      %1067 = vmatpush.msra.mxu0 0.0
      %1068 = vmatpush.msra.mxu0 %v1007
      %1069 = vmatpush.msra.mxu0 %v1005
      %1070 = vmatmul.f32.gmra.mxu0 %v1014
      %v1071 = vpop.f32.mrf.mxu0
      %v1072 = vadd.f32 0.0, %v1071
      %1073 = vmatmul.f32.gmra.mxu0 %v1017
      %v1074 = vpop.f32.mrf.mxu0
      %v1075 = vadd.f32 0.0, %v1074
      %1076 = vmatmul.f32.gmra.mxu0 %v1020
      %v1077 = vpop.f32.mrf.mxu0
      %v1078 = vadd.f32 0.0, %v1077
      %1079 = vmatmul.f32.gmra.mxu0 %v1023
      %v1080 = vpop.f32.mrf.mxu0
      %v1081 = vadd.f32 0.0, %v1080
      %1082 = vdwg.mxu0
      %v1083 = vadd.f32 %v930, %v1043
      %v1084 = vadd.f32 %v931, %v1072
      %v1085 = vadd.f32 %v932, %v1046
      %v1086 = vadd.f32 %v933, %v1075
      %v1087 = vadd.f32 %v934, %v1049
      %v1088 = vadd.f32 %v935, %v1078
      %v1089 = vadd.f32 %v936, %v1052
      %v1090 = vadd.f32 %v937, %v1081
      %v1091 = vmax.f32 %v1083, 0.0
      %v1092 = vmax.f32 %v1084, 0.0
      %v1093 = vmax.f32 %v1085, 0.0
      %v1094 = vmax.f32 %v1086, 0.0
      %v1095 = vmax.f32 %v1087, 0.0
      %v1096 = vmax.f32 %v1088, 0.0
      %v1097 = vmax.f32 %v1089, 0.0
      %v1098 = vmax.f32 %v1090, 0.0
      %1099 = vst [vmem:[#allocation1] ss:$2 sm:$0xff] %v360
      %v1100 = vld.sshfl [vmem:[#allocation1] sm:$0xff pattern:$0x75316420]
      %v1101 = vld.sshfl [vmem:[#allocation1 + $0x8] sm:$0xff pattern:$0x75316420]
      %v1104 = vsel %vm406, %v1100, 0.0
      %v1105 = vsel %vm406, %v1101, 0.0
      %v1106 = vadd.f32 %v1104, %v1105
      %1107 = vadd.xlane.f32.xlu0 %v1106
      %v1108 = vpop.xlane.xlu0 %1107
      %v1109 = vrcp.pop 256.0
      %v1110 = vmul.f32 256.0, %v1109
      %v1111 = vsub.f32 1.0, %v1110
      %v1112 = vmul.f32 %v1109, %v1111
      %v1113 = vadd.f32 %v1109, %v1112
      %vm1114 = vweird.f32 %v1109
      %v1115 = vsel %vm1114, %v1109, %v1113
      %v1116 = vmul.f32 %v1108, %v1115
      %v1117 = vld [vmem:[%s5] sm:$0xff]
      %v1118 = vld [vmem:[%s6] sm:$0xff]
      %v1120 = vsel %vm393, %v1117, 0
      %v1123 = vsel %vm406, %v1116, 0
      %1125 = vmatpush.msra.mxu0 0.0
      %1126 = vmatpush.msra.mxu0 0.0
      %1127 = vmatpush.msra.mxu0 0.0
      %1128 = vmatpush.msra.mxu0 0.0
      %1129 = vmatpush.msra.mxu0 0.0
      %1130 = vmatpush.msra.mxu0 0.0
      %1131 = vmatpush.msra.mxu0 0.0
      %1132 = vmatpush.msra.mxu0 0.0
      %1133 = vmatpush.msra.mxu0 0.0
      %1134 = vmatpush.msra.mxu0 0.0
      %1135 = vmatpush.msra.mxu0 0.0
      %1136 = vmatpush.msra.mxu0 0.0
      %1137 = vmatpush.msra.mxu0 0.0
      %1138 = vmatpush.msra.mxu0 0.0
      %1139 = vmatpush.msra.mxu0 0.0
      %1140 = vmatpush.msra.mxu0 %v1123
      %1141 = vmatmul.f32.gmra.mxu0 %v1120
      %v1142 = vpop.f32.mrf.mxu0
      %v1143 = vadd.f32 %v1118, %v1142
      %1144 = vdwg.mxu0
      %v1145 = vmax.f32 %v1143, 0.0
      %v1146 = vld [vmem:[%s8] sm:$0xff]
      %v1147 = vld [vmem:[%s9] sm:$0xff]
      %vm1148 = vcmask 64512
      %v1150 = vsel %vm1148, %v1146, 0
      %1152 = vmatpush.msra.mxu0 0.0
      %1153 = vmatpush.msra.mxu0 0.0
      %1154 = vmatpush.msra.mxu0 0.0
      %1155 = vmatpush.msra.mxu0 0.0
      %1156 = vmatpush.msra.mxu0 0.0
      %1157 = vmatpush.msra.mxu0 0.0
      %1158 = vmatpush.msra.mxu0 0.0
      %1159 = vmatpush.msra.mxu0 0.0
      %1160 = vmatpush.msra.mxu0 0.0
      %1161 = vmatpush.msra.mxu0 0.0
      %1162 = vmatpush.msra.mxu0 0.0
      %1163 = vmatpush.msra.mxu0 0.0
      %1164 = vmatpush.msra.mxu0 0.0
      %1165 = vmatpush.msra.mxu0 0.0
      %1166 = vmatpush.msra.mxu0 0.0
      %1167 = vmatpush.msra.mxu0 %v1145
      %1168 = vmatmul.f32.gmra.mxu0 %v1150
      %v1169 = vpop.f32.mrf.mxu0
      %v1170 = vadd.f32 %v1147, %v1169
      %1171 = vdwg.mxu0
      %v1172 = vld [vmem:[%s7] sm:$0xff]
      %1174 = vset.pattern.permute.xlu0 0
      %1175 = vperm.xlu0 %1174, %v1170
      %v1176 = vpop.permute.xlu0 %1175
      %vm1178 = vcmask 261120
      %v1180 = vsel %vm1178, %v1172, 0
      %1182 = vmatpush.msra.mxu0 0.0
      %1183 = vmatpush.msra.mxu0 0.0
      %1184 = vmatpush.msra.mxu0 0.0
      %1185 = vmatpush.msra.mxu0 0.0
      %1186 = vmatpush.msra.mxu0 0.0
      %1187 = vmatpush.msra.mxu0 0.0
      %1188 = vmatpush.msra.mxu0 0.0
      %1189 = vmatpush.msra.mxu0 0.0
      %1190 = vmatpush.msra.mxu0 0.0
      %1191 = vmatpush.msra.mxu0 0.0
      %1192 = vmatpush.msra.mxu0 0.0
      %1193 = vmatpush.msra.mxu0 0.0
      %1194 = vmatpush.msra.mxu0 %v1097
      %1195 = vmatpush.msra.mxu0 %v1095
      %1196 = vmatpush.msra.mxu0 %v1093
      %1197 = vmatpush.msra.mxu0 %v1091
      %1198 = vmatmul.f32.gmra.mxu0 %v1180
      %v1199 = vpop.f32.mrf.mxu0
      %v1200 = vadd.f32 %v1176, %v1199
      %1201 = vdwg.mxu0
      %1202 = vmatpush.msra.mxu0 0.0
      %1203 = vmatpush.msra.mxu0 0.0
      %1204 = vmatpush.msra.mxu0 0.0
      %1205 = vmatpush.msra.mxu0 0.0
      %1206 = vmatpush.msra.mxu0 0.0
      %1207 = vmatpush.msra.mxu0 0.0
      %1208 = vmatpush.msra.mxu0 0.0
      %1209 = vmatpush.msra.mxu0 0.0
      %1210 = vmatpush.msra.mxu0 0.0
      %1211 = vmatpush.msra.mxu0 0.0
      %1212 = vmatpush.msra.mxu0 0.0
      %1213 = vmatpush.msra.mxu0 0.0
      %1214 = vmatpush.msra.mxu0 %v1098
      %1215 = vmatpush.msra.mxu0 %v1096
      %1216 = vmatpush.msra.mxu0 %v1094
      %1217 = vmatpush.msra.mxu0 %v1092
      %1218 = vmatmul.f32.gmra.mxu0 %v1180
      %v1219 = vpop.f32.mrf.mxu0
      %v1220 = vadd.f32 %v1176, %v1219
      %1221 = vdwg.mxu0
      %v1222 = vmax.f32 %v1200, 0.0
      %v1223 = vmax.f32 %v1220, 0.0
      %1224 = vst [vmem:[%s359] sm:$0xff] %v1222
      %1225 = vst [vmem:[%s359 + $0x8] sm:$0xff] %v1223
      %p1226 = scmp.lt.s32.totalorder %s21, 1
      %s1227 = scalar_select %p1226, %s21, 1
      %s1228 = smul.addr %s1227, 2
      %s1229 = smul.addr %s1228, 8
      %s1230 = scalar_lea.vmem %s10, %s1229
      // Predicated region
      $region61: #{_forward.1} parent=59 // pred_check
        %p1231 = pneg %p254
      $region62: #{_forward.1} parent=59 // pred_check_branch
        %1233 = sbr.rel (%p1231) target = $region64
      $region63: #{_forward.1} parent=59 // pred_region
        _
      $region64: #{_forward.1} parent=59 // pred_fallthru
        _
    $region60: #{_forward.1} parent=5 // pred_fallthru
      _
    %p1234 = scmp.le.s32.totalorder 2, %s16
    // Predicated region
    $region65: #{_forward.1} parent=5 // pred_check
      %p1235 = pneg %p1234
    $region66: #{_forward.1} parent=5 // pred_check_branch
      %1237 = sbr.rel (%p1235) target = $region68
    $region67: #{_forward.1} parent=5 // pred_region
      %s1238 = ssub.s32 %s16, 2
      // Predicated region
      $region69: #{_forward.1} parent=67 // pred_check
        %p1239 = pneg %p260
      $region70: #{_forward.1} parent=67 // pred_check_branch
        %1241 = sbr.rel (%p1239) target = $region72
      $region71: #{_forward.1} parent=67 // pred_region
        %p1242 = scmp.lt.s32.totalorder %s22, 1
        %s1243 = scalar_select %p1242, %s22, 1
        %s1244 = smul.addr %s1243, 2
        %s1245 = smul.addr %s1244, 8
        %s1246 = scalar_lea.vmem %s10, %s1245
      $region72: #{_forward.1} parent=67 // pred_fallthru
        _
    $region68: #{_forward.1} parent=5 // pred_fallthru
      _
  $region6: #{_forward.1} parent=0 // loop_footer
    %s20 = sadd.s32 1, %s16
  $region7: #{_forward.1} parent=0 // loop_footer_branch
    %15 = sbr.rel target = $region3
  $region8: #{_forward.1} parent=0 // loop_exit
    _

</llo_original>
